<compile_context>
chip_gen: v7x
topology: tpu7x:2x2x1
jax: 0.10.0
libtpu: 0.0.40
codegen_flags: <defaults>
</compile_context>

<pallas_src>
import functools

import jax
import jax.numpy as jnp
from jax.experimental import pallas as pl
from jax.experimental.pallas import tpu as pltpu


# ----------------------------------------------------------------------------
# Pallas kernels
# ----------------------------------------------------------------------------
def _mm_bias_act_kernel(x_ref, w_ref, b_ref, o_ref, *, act, mxu_dtype):
    """Fused (tm,K)@(K,N) + bias(1,N) -> activation; bf16 MXU inputs, f32 accum."""
    x = x_ref[...]
    w = w_ref[...]
    if mxu_dtype is not None:
        x = x.astype(mxu_dtype)
        w = w.astype(mxu_dtype)
    y = jnp.dot(x, w, preferred_element_type=jnp.float32)
    y = y + b_ref[...]                       # f32 epilogue (safe on v5e too)
    if act == "relu":
        y = jnp.maximum(y, 0.0)
    elif act == "sigmoid":
        y = jax.nn.sigmoid(y)
    o_ref[...] = y.astype(o_ref.dtype)


def matmul_bias_act(x, w, b, act, *, mxu_dtype=jnp.bfloat16, block_m=256):
    """act(x @ w + b); M-tiled grid ("parallel") so it pipelines / uses both TCs."""
    M, K = x.shape
    N = w.shape[1]
    b2 = b.reshape(1, N).astype(jnp.float32)
    tm = block_m if (M > block_m and M % block_m == 0) else M
    kernel = functools.partial(_mm_bias_act_kernel, act=act, mxu_dtype=mxu_dtype)
    return pl.pallas_call(
        kernel,
        out_shape=jax.ShapeDtypeStruct((M, N), jnp.float32),
        grid=(M // tm,),
        in_specs=[
            pl.BlockSpec((tm, K), lambda i: (i, 0)),
            pl.BlockSpec((K, N), lambda i: (0, 0)),
            pl.BlockSpec((1, N), lambda i: (0, 0)),
        ],
        out_specs=pl.BlockSpec((tm, N), lambda i: (i, 0)),
        compiler_params=pltpu.CompilerParams(
            dimension_semantics=("parallel",)),
    )(x, w, b2)


def _bottleneck_kernel(h_ref, ew_ref, eb_ref, mw_ref, mb_ref, vw_ref, vb_ref,
                       eps_ref, dw_ref, db_ref,
                       mu_ref, lv_ref, d_ref):
    """enc_fc(+ReLU) -> mu / log_var -> z = mu + eps*exp(0.5*lv) -> dec_fc(+ReLU)."""
    h = jnp.dot(h_ref[...], ew_ref[...], preferred_element_type=jnp.float32) + eb_ref[...]
    h = jnp.maximum(h, 0.0)
    mu = jnp.dot(h, mw_ref[...], preferred_element_type=jnp.float32) + mb_ref[...]
    lv = jnp.dot(h, vw_ref[...], preferred_element_type=jnp.float32) + vb_ref[...]
    z = mu + eps_ref[...] * jnp.exp(0.5 * lv)        # reparameterization (exp -> EUP)
    d = jnp.dot(z, dw_ref[...], preferred_element_type=jnp.float32) + db_ref[...]
    d = jnp.maximum(d, 0.0)
    mu_ref[...] = mu
    lv_ref[...] = lv
    d_ref[...] = d


def _full_spec(shape):
    n = len(shape)
    return pl.BlockSpec(shape, lambda *args: (0,) * n)


def fused_bottleneck(h_flat, p, eps):
    """One pallas_call covering enc_fc, fc_mu, fc_log_var, sample_z and dec_fc."""
    B, F = h_flat.shape
    L = p["fc_mu"]["w"].shape[1]
    args = (h_flat,
            p["enc_fc"]["w"], p["enc_fc"]["b"],
            p["fc_mu"]["w"], p["fc_mu"]["b"],
            p["fc_log_var"]["w"], p["fc_log_var"]["b"],
            eps,
            p["dec_fc"]["w"], p["dec_fc"]["b"])
    mu, lv, d = pl.pallas_call(
        _bottleneck_kernel,
        out_shape=(jax.ShapeDtypeStruct((B, L), jnp.float32),
                   jax.ShapeDtypeStruct((B, L), jnp.float32),
                   jax.ShapeDtypeStruct((B, F), jnp.float32)),
        in_specs=[_full_spec(a.shape) for a in args],
        out_specs=(_full_spec((B, L)), _full_spec((B, L)), _full_spec((B, F))),
    )(*args)
    return mu, lv, d


# ----------------------------------------------------------------------------
# Conv helpers (patch extraction is XLA glue; all matmuls are Pallas)
# ----------------------------------------------------------------------------
def _extract_patches(x, ksize, stride, pad):
    """(B,H,W,C) -> (B,Ho,Wo,ksize*ksize*C); tap-major, channel-minor ordering."""
    B, H, W, C = x.shape
    xp = jnp.pad(x, ((0, 0), pad[0], pad[1], (0, 0)))
    Hp = H + pad[0][0] + pad[0][1]
    Wp = W + pad[1][0] + pad[1][1]
    Ho = (Hp - ksize) // stride + 1
    Wo = (Wp - ksize) // stride + 1
    cols = []
    for kh in range(ksize):
        for kw in range(ksize):
            cols.append(xp[:, kh:kh + stride * (Ho - 1) + 1:stride,
                              kw:kw + stride * (Wo - 1) + 1:stride, :])
    return jnp.concatenate(cols, axis=-1), Ho, Wo


def conv2d(x_nhwc, wm, b, *, stride, pad, act):
    """Conv2d(k=3) with matmul-ready weight wm: (9*Cin, Cout)."""
    B = x_nhwc.shape[0]
    patches, Ho, Wo = _extract_patches(x_nhwc, 3, stride, pad)
    y = matmul_bias_act(patches.reshape(B * Ho * Wo, patches.shape[-1]), wm, b, act)
    return y.reshape(B, Ho, Wo, wm.shape[1])


def deconv2x(x_nhwc, w_big, b_big, cout):
    """ConvTranspose2d(k=3,s=2,p=1,output_padding=1)+ReLU via sub-pixel decomposition.

    2x2 patches of the (small) input @ (4*Cin, 4*Cout) weight -> the 4 output
    parity images at once (lane-dense), then pixel-shuffle to (2H, 2W).
    """
    B, H, W, Cin = x_nhwc.shape
    patches, _, _ = _extract_patches(x_nhwc, 2, 1, ((0, 1), (0, 1)))       # (B,H,W,4*Cin)
    y = matmul_bias_act(patches.reshape(B * H * W, 4 * Cin), w_big, b_big, "relu")
    y = y.reshape(B, H, W, 2, 2, cout)                                     # (b,i,j,pr,pc,co)
    return jnp.transpose(y, (0, 1, 3, 2, 4, 5)).reshape(B, 2 * H, 2 * W, cout)


# ----------------------------------------------------------------------------
# Parameters: torch-layout init, then a one-time prep into kernel layout
# ----------------------------------------------------------------------------
def init_vae_params(key, image_size, input_dim, conv_dims, fc_dim, latent_dim):
    """Random params in PyTorch layouts (OIHW convs, IOHW deconvs, (out,in) linears)."""
    keys = iter(jax.random.split(key, 64))

    def w(shape, scale=0.05):
        return scale * jax.random.normal(next(keys), shape, dtype=jnp.float32)

    def bias(n):
        return 0.01 * jax.random.normal(next(keys), (n,), dtype=jnp.float32)

    raw = {}
    enc_convs = []
    prev = input_dim
    for cd in conv_dims:
        enc_convs.append({"w": w((cd, prev, 3, 3)), "b": bias(cd)})        # OIHW
        prev = cd
    raw["enc_convs"] = enc_convs
    conv_size = image_size // (2 ** len(conv_dims))
    flat_dim = conv_size * conv_size * conv_dims[-1]
    raw["enc_fc"] = {"w": w((fc_dim, flat_dim)), "b": bias(fc_dim)}
    raw["fc_mu"] = {"w": w((latent_dim, fc_dim)), "b": bias(latent_dim)}
    raw["fc_log_var"] = {"w": w((latent_dim, fc_dim)), "b": bias(latent_dim)}
    raw["dec_fc"] = {"w": w((flat_dim, latent_dim)), "b": bias(flat_dim)}
    dec_convs = []
    prev = conv_dims[-1]
    for cd in conv_dims[::-1]:
        dec_convs.append({"w": w((prev, cd, 3, 3)), "b": bias(cd)})        # IOHW
        prev = cd
    raw["dec_convs"] = dec_convs
    raw["pred"] = {"w": w((input_dim, prev, 3, 3)), "b": bias(input_dim)}  # OIHW
    raw["conv_size"] = conv_size
    raw["conv_dims"] = tuple(conv_dims)
    return raw


def _conv_weight_matrix(w_oihw):
    Cout, Cin, KH, KW = w_oihw.shape
    return jnp.transpose(w_oihw, (2, 3, 1, 0)).reshape(KH * KW * Cin, Cout)


# (output parity, 2x2-patch offset) -> transposed-conv kernel tap (None = no tap)
_SUBPIX_TAP = {(0, 0): 1, (0, 1): None, (1, 0): 2, (1, 1): 0}


def _deconv_weight_matrix(w_iohw):
    """IOHW ConvTranspose2d(3x3,s=2,p=1,op=1) weight -> (4*Cin, 4*Cout) sub-pixel weight."""
    Cin, Cout, _, _ = w_iohw.shape
    blocks = []
    for pr in (0, 1):
        for pc in (0, 1):
            blk = jnp.zeros((2, 2, Cin, Cout), w_iohw.dtype)
            for dr in (0, 1):
                kh = _SUBPIX_TAP[(pr, dr)]
                if kh is None:
                    continue
                for dc in (0, 1):
                    kw = _SUBPIX_TAP[(pc, dc)]
                    if kw is None:
                        continue
                    blk = blk.at[dr, dc].set(w_iohw[:, :, kh, kw])         # (Cin, Cout)
            blocks.append(blk.reshape(4 * Cin, Cout))
    return jnp.concatenate(blocks, axis=1)                                  # (4*Cin, 4*Cout)


def prepare_params(raw):
    """Fold layout transposes into the weights; reshape everything matmul-ready."""
    cs = raw["conv_size"]
    conv_dims = raw["conv_dims"]
    c_last = conv_dims[-1]
    p = {"conv_size": cs, "conv_dims": conv_dims}

    p["enc_convs"] = [{"w": _conv_weight_matrix(l["w"]), "b": l["b"]}
                      for l in raw["enc_convs"]]

    # enc_fc: torch consumes an NCHW flatten -> permute its input columns to NHWC order.
    fc_dim, flat_dim = raw["enc_fc"]["w"].shape
    ew = raw["enc_fc"]["w"].reshape(fc_dim, c_last, cs, cs)
    ew = jnp.transpose(ew, (2, 3, 1, 0)).reshape(flat_dim, fc_dim)          # (in_hwc, out)
    p["enc_fc"] = {"w": ew, "b": raw["enc_fc"]["b"].reshape(1, fc_dim)}

    latent = raw["fc_mu"]["w"].shape[0]
    p["fc_mu"] = {"w": raw["fc_mu"]["w"].T, "b": raw["fc_mu"]["b"].reshape(1, latent)}
    p["fc_log_var"] = {"w": raw["fc_log_var"]["w"].T,
                       "b": raw["fc_log_var"]["b"].reshape(1, latent)}

    # dec_fc: torch output is an NCHW flatten -> permute its output rows to NHWC order.
    dw = raw["dec_fc"]["w"].reshape(c_last, cs, cs, latent)
    dw = jnp.transpose(dw, (1, 2, 0, 3)).reshape(flat_dim, latent)
    db = jnp.transpose(raw["dec_fc"]["b"].reshape(c_last, cs, cs), (1, 2, 0))
    p["dec_fc"] = {"w": dw.T, "b": db.reshape(1, flat_dim)}                 # (latent, flat_hwc)

    p["dec_convs"] = [{"w": _deconv_weight_matrix(l["w"]),
                       "b": jnp.tile(l["b"], 4),
                       "cout": l["w"].shape[1]} for l in raw["dec_convs"]]

    p["pred"] = {"w": _conv_weight_matrix(raw["pred"]["w"]), "b": raw["pred"]["b"]}
    return p


# ----------------------------------------------------------------------------
# Forward
# ----------------------------------------------------------------------------
def vae_forward(params, x_nchw, eps):
    """Returns (recon, mu, log_var); recon in NCHW like PyTorch."""
    B = x_nchw.shape[0]
    cs = params["conv_size"]
    c_last = params["conv_dims"][-1]

    # ---------------- Encoder ----------------
    h = jnp.transpose(x_nchw, (0, 2, 3, 1))                                 # NCHW -> NHWC
    for layer in params["enc_convs"]:
        h = conv2d(h, layer["w"], layer["b"], stride=2, pad=((1, 1), (1, 1)), act="relu")
    h_flat = h.reshape(B, -1)           # NHWC flatten; enc_fc weight pre-permuted to match

    # ------- fused bottleneck: enc_fc -> mu/log_var -> sample_z -> dec_fc -------
    mu, log_var, d = fused_bottleneck(h_flat, params, eps)

    # ---------------- Decoder ----------------
    d = d.reshape(B, cs, cs, c_last)    # dec_fc weight pre-permuted -> straight to NHWC
    for layer in params["dec_convs"]:
        d = deconv2x(d, layer["w"], layer["b"], layer["cout"])
    d = conv2d(d, params["pred"]["w"], params["pred"]["b"],
               stride=1, pad=((1, 1), (1, 1)), act="sigmoid")
    recon = jnp.transpose(d, (0, 3, 1, 2))                                  # NHWC -> NCHW
    return recon, mu, log_var


# ----------------------------------------------------------------------------
# main
# ----------------------------------------------------------------------------
if __name__ == "__main__":
    image_size, input_dim = 16, 4
    conv_dims, fc_dim, latent_dim = [8, 16], 32, 8
    batch = 2

    root = jax.random.PRNGKey(0)
    k_params, k_x, k_eps = jax.random.split(root, 3)

    raw = init_vae_params(k_params, image_size, input_dim, conv_dims, fc_dim, latent_dim)
    params = prepare_params(raw)

    x = jax.random.normal(k_x, (batch, input_dim, image_size, image_size), dtype=jnp.float32)
    eps = jax.random.normal(k_eps, (batch, latent_dim), dtype=jnp.float32)

    fwd = jax.jit(functools.partial(vae_forward, params))
    recon, mu, log_var = fwd(x, eps)
    jax.block_until_ready((recon, mu, log_var))

    assert recon.shape == (batch, input_dim, image_size, image_size), recon.shape
    assert mu.shape == (batch, latent_dim) and log_var.shape == (batch, latent_dim)
    assert bool(jnp.all(jnp.isfinite(mu)) & jnp.all(jnp.isfinite(log_var)))
    assert bool(jnp.all((recon >= 0.0) & (recon <= 1.0)))   # sigmoid output range

    print("KERNEL_OK")
</pallas_src>

<mosaic_0001>
module attributes {stable_mosaic.version = 11 : i64} {
  func.func @_mm_bias_act_kernel(%arg0: i32, %arg1: memref<128x36xf32, #tpu.memory_space<vmem>>, %arg2: memref<36x8xf32, #tpu.memory_space<vmem>>, %arg3: memref<1x8xf32, #tpu.memory_space<vmem>>, %arg4: memref<128x8xf32, #tpu.memory_space<vmem>>) attributes {dimension_semantics = [#tpu.dimension_semantics<parallel>], iteration_bounds = array<i64: 1>, scalar_prefetch = 0 : i64, scratch_operands = 0 : i64, tpu.core_type = #tpu.core_type<tc>, window_params = [{transform_indices = @transform_0, window_bounds = array<i64: 128, 36>}, {pipeline_mode = #tpu.pipeline_mode<synchronous>, transform_indices = @transform_1, window_bounds = array<i64: 36, 8>}, {pipeline_mode = #tpu.pipeline_mode<synchronous>, transform_indices = @transform_2, window_bounds = array<i64: 1, 8>}, {transform_indices = @transform_3, window_bounds = array<i64: 128, 8>}]} {
    %c0 = arith.constant 0 : index
    %c0_0 = arith.constant 0 : index
    %0 = vector.load %arg1[%c0, %c0_0] : memref<128x36xf32, #tpu.memory_space<vmem>>, vector<128x36xf32>
    %c0_1 = arith.constant 0 : index
    %c0_2 = arith.constant 0 : index
    %1 = vector.load %arg2[%c0_1, %c0_2] : memref<36x8xf32, #tpu.memory_space<vmem>>, vector<36x8xf32>
    %2 = arith.truncf %0 : vector<128x36xf32> to vector<128x36xbf16>
    %3 = arith.truncf %1 : vector<36x8xf32> to vector<36x8xbf16>
    %cst = arith.constant dense<0.000000e+00> : vector<128x8xf32>
    %4 = tpu.matmul %2, %3, %cst {dimension_numbers = #tpu.dot_dimension_numbers<[1], [0], [0], [1], [0, 0, 1, 1], [], []>} : vector<128x36xbf16>, vector<36x8xbf16>, vector<128x8xf32> -> vector<128x8xf32>
    %c0_3 = arith.constant 0 : index
    %c0_4 = arith.constant 0 : index
    %5 = vector.load %arg3[%c0_3, %c0_4] : memref<1x8xf32, #tpu.memory_space<vmem>>, vector<1x8xf32>
    %6 = vector.broadcast %5 : vector<1x8xf32> to vector<128x8xf32>
    %7 = arith.addf %4, %6 : vector<128x8xf32>
    %cst_5 = arith.constant 0.000000e+00 : f32
    %8 = vector.broadcast %cst_5 : f32 to vector<128x8xf32>
    %9 = arith.maximumf %7, %8 : vector<128x8xf32>
    %c0_6 = arith.constant 0 : index
    %c0_7 = arith.constant 0 : index
    %10 = vector.load %arg4[%c0_6, %c0_7] : memref<128x8xf32, #tpu.memory_space<vmem>>, vector<128x8xf32>
    tpu.vector_store %arg4[%c0_6, %c0_7], %9 {strides = array<i32>} : memref<128x8xf32, #tpu.memory_space<vmem>>, vector<128x8xf32>,
    return
  }
  func.func @transform_0(%arg0: i32) -> (i32, i32) {
    %c0_i32 = arith.constant 0 : i32
    %c0_i32_0 = arith.constant 0 : i32
    return %arg0, %c0_i32 : i32, i32
  }
  func.func @transform_1(%arg0: i32) -> (i32, i32) {
    %c0_i32 = arith.constant 0 : i32
    %c0_i32_0 = arith.constant 0 : i32
    %c0_i32_1 = arith.constant 0 : i32
    return %c0_i32, %c0_i32_0 : i32, i32
  }
  func.func @transform_2(%arg0: i32) -> (i32, i32) {
    %c0_i32 = arith.constant 0 : i32
    %c0_i32_0 = arith.constant 0 : i32
    %c0_i32_1 = arith.constant 0 : i32
    return %c0_i32, %c0_i32_0 : i32, i32
  }
  func.func @transform_3(%arg0: i32) -> (i32, i32) {
    %c0_i32 = arith.constant 0 : i32
    %c0_i32_0 = arith.constant 0 : i32
    return %arg0, %c0_i32 : i32, i32
  }
}

module attributes {stable_mosaic.version = 11 : i64} {
  func.func @_mm_bias_act_kernel(%arg0: i32, %arg1: memref<32x72xf32, #tpu.memory_space<vmem>>, %arg2: memref<72x16xf32, #tpu.memory_space<vmem>>, %arg3: memref<1x16xf32, #tpu.memory_space<vmem>>, %arg4: memref<32x16xf32, #tpu.memory_space<vmem>>) attributes {dimension_semantics = [#tpu.dimension_semantics<parallel>], iteration_bounds = array<i64: 1>, scalar_prefetch = 0 : i64, scratch_operands = 0 : i64, tpu.core_type = #tpu.core_type<tc>, window_params = [{transform_indices = @transform_0, window_bounds = array<i64: 32, 72>}, {pipeline_mode = #tpu.pipeline_mode<synchronous>, transform_indices = @transform_1, window_bounds = array<i64: 72, 16>}, {pipeline_mode = #tpu.pipeline_mode<synchronous>, transform_indices = @transform_2, window_bounds = array<i64: 1, 16>}, {transform_indices = @transform_3, window_bounds = array<i64: 32, 16>}]} {
    %c0 = arith.constant 0 : index
    %c0_0 = arith.constant 0 : index
    %0 = vector.load %arg1[%c0, %c0_0] : memref<32x72xf32, #tpu.memory_space<vmem>>, vector<32x72xf32>
    %c0_1 = arith.constant 0 : index
    %c0_2 = arith.constant 0 : index
    %1 = vector.load %arg2[%c0_1, %c0_2] : memref<72x16xf32, #tpu.memory_space<vmem>>, vector<72x16xf32>
    %2 = arith.truncf %0 : vector<32x72xf32> to vector<32x72xbf16>
    %3 = arith.truncf %1 : vector<72x16xf32> to vector<72x16xbf16>
    %cst = arith.constant dense<0.000000e+00> : vector<32x16xf32>
    %4 = tpu.matmul %2, %3, %cst {dimension_numbers = #tpu.dot_dimension_numbers<[1], [0], [0], [1], [0, 0, 1, 1], [], []>} : vector<32x72xbf16>, vector<72x16xbf16>, vector<32x16xf32> -> vector<32x16xf32>
    %c0_3 = arith.constant 0 : index
    %c0_4 = arith.constant 0 : index
    %5 = vector.load %arg3[%c0_3, %c0_4] : memref<1x16xf32, #tpu.memory_space<vmem>>, vector<1x16xf32>
    %6 = vector.broadcast %5 : vector<1x16xf32> to vector<32x16xf32>
    %7 = arith.addf %4, %6 : vector<32x16xf32>
    %cst_5 = arith.constant 0.000000e+00 : f32
    %8 = vector.broadcast %cst_5 : f32 to vector<32x16xf32>
    %9 = arith.maximumf %7, %8 : vector<32x16xf32>
    %c0_6 = arith.constant 0 : index
    %c0_7 = arith.constant 0 : index
    %10 = vector.load %arg4[%c0_6, %c0_7] : memref<32x16xf32, #tpu.memory_space<vmem>>, vector<32x16xf32>
    tpu.vector_store %arg4[%c0_6, %c0_7], %9 {strides = array<i32>} : memref<32x16xf32, #tpu.memory_space<vmem>>, vector<32x16xf32>,
    return
  }
  func.func @transform_0(%arg0: i32) -> (i32, i32) {
    %c0_i32 = arith.constant 0 : i32
    %c0_i32_0 = arith.constant 0 : i32
    return %arg0, %c0_i32 : i32, i32
  }
  func.func @transform_1(%arg0: i32) -> (i32, i32) {
    %c0_i32 = arith.constant 0 : i32
    %c0_i32_0 = arith.constant 0 : i32
    %c0_i32_1 = arith.constant 0 : i32
    return %c0_i32, %c0_i32_0 : i32, i32
  }
  func.func @transform_2(%arg0: i32) -> (i32, i32) {
    %c0_i32 = arith.constant 0 : i32
    %c0_i32_0 = arith.constant 0 : i32
    %c0_i32_1 = arith.constant 0 : i32
    return %c0_i32, %c0_i32_0 : i32, i32
  }
  func.func @transform_3(%arg0: i32) -> (i32, i32) {
    %c0_i32 = arith.constant 0 : i32
    %c0_i32_0 = arith.constant 0 : i32
    return %arg0, %c0_i32 : i32, i32
  }
}

module attributes {stable_mosaic.version = 11 : i64} {
  func.func @_bottleneck_kernel(%arg0: memref<2x256xf32, #tpu.memory_space<vmem>>, %arg1: memref<256x32xf32, #tpu.memory_space<vmem>>, %arg2: memref<1x32xf32, #tpu.memory_space<vmem>>, %arg3: memref<32x8xf32, #tpu.memory_space<vmem>>, %arg4: memref<1x8xf32, #tpu.memory_space<vmem>>, %arg5: memref<32x8xf32, #tpu.memory_space<vmem>>, %arg6: memref<1x8xf32, #tpu.memory_space<vmem>>, %arg7: memref<2x8xf32, #tpu.memory_space<vmem>>, %arg8: memref<8x256xf32, #tpu.memory_space<vmem>>, %arg9: memref<1x256xf32, #tpu.memory_space<vmem>>, %arg10: memref<2x8xf32, #tpu.memory_space<vmem>>, %arg11: memref<2x8xf32, #tpu.memory_space<vmem>>, %arg12: memref<2x256xf32, #tpu.memory_space<vmem>>) attributes {dimension_semantics = [], scalar_prefetch = 0 : i64, scratch_operands = 0 : i64, tpu.core_type = #tpu.core_type<tc>} {
    %c0 = arith.constant 0 : index
    %c0_0 = arith.constant 0 : index
    %0 = vector.load %arg0[%c0, %c0_0] : memref<2x256xf32, #tpu.memory_space<vmem>>, vector<2x256xf32>
    %c0_1 = arith.constant 0 : index
    %c0_2 = arith.constant 0 : index
    %1 = vector.load %arg1[%c0_1, %c0_2] : memref<256x32xf32, #tpu.memory_space<vmem>>, vector<256x32xf32>
    %cst = arith.constant dense<0.000000e+00> : vector<2x32xf32>
    %2 = tpu.matmul %0, %1, %cst {dimension_numbers = #tpu.dot_dimension_numbers<[1], [0], [0], [1], [0, 0, 1, 1], [], []>} : vector<2x256xf32>, vector<256x32xf32>, vector<2x32xf32> -> vector<2x32xf32>
    %c0_3 = arith.constant 0 : index
    %c0_4 = arith.constant 0 : index
    %3 = vector.load %arg2[%c0_3, %c0_4] : memref<1x32xf32, #tpu.memory_space<vmem>>, vector<1x32xf32>
    %4 = vector.broadcast %3 : vector<1x32xf32> to vector<2x32xf32>
    %5 = arith.addf %2, %4 : vector<2x32xf32>
    %cst_5 = arith.constant 0.000000e+00 : f32
    %6 = vector.broadcast %cst_5 : f32 to vector<2x32xf32>
    %7 = arith.maximumf %5, %6 : vector<2x32xf32>
    %c0_6 = arith.constant 0 : index
    %c0_7 = arith.constant 0 : index
    %8 = vector.load %arg3[%c0_6, %c0_7] : memref<32x8xf32, #tpu.memory_space<vmem>>, vector<32x8xf32>
    %cst_8 = arith.constant dense<0.000000e+00> : vector<2x8xf32>
    %9 = tpu.matmul %7, %8, %cst_8 {dimension_numbers = #tpu.dot_dimension_numbers<[1], [0], [0], [1], [0, 0, 1, 1], [], []>} : vector<2x32xf32>, vector<32x8xf32>, vector<2x8xf32> -> vector<2x8xf32>
    %c0_9 = arith.constant 0 : index
    %c0_10 = arith.constant 0 : index
    %10 = vector.load %arg4[%c0_9, %c0_10] : memref<1x8xf32, #tpu.memory_space<vmem>>, vector<1x8xf32>
    %11 = vector.broadcast %10 : vector<1x8xf32> to vector<2x8xf32>
    %12 = arith.addf %9, %11 : vector<2x8xf32>
    %c0_11 = arith.constant 0 : index
    %c0_12 = arith.constant 0 : index
    %13 = vector.load %arg5[%c0_11, %c0_12] : memref<32x8xf32, #tpu.memory_space<vmem>>, vector<32x8xf32>
    %cst_13 = arith.constant dense<0.000000e+00> : vector<2x8xf32>
    %14 = tpu.matmul %7, %13, %cst_13 {dimension_numbers = #tpu.dot_dimension_numbers<[1], [0], [0], [1], [0, 0, 1, 1], [], []>} : vector<2x32xf32>, vector<32x8xf32>, vector<2x8xf32> -> vector<2x8xf32>
    %c0_14 = arith.constant 0 : index
    %c0_15 = arith.constant 0 : index
    %15 = vector.load %arg6[%c0_14, %c0_15] : memref<1x8xf32, #tpu.memory_space<vmem>>, vector<1x8xf32>
    %16 = vector.broadcast %15 : vector<1x8xf32> to vector<2x8xf32>
    %17 = arith.addf %14, %16 : vector<2x8xf32>
    %c0_16 = arith.constant 0 : index
    %c0_17 = arith.constant 0 : index
    %18 = vector.load %arg7[%c0_16, %c0_17] : memref<2x8xf32, #tpu.memory_space<vmem>>, vector<2x8xf32>
    %cst_18 = arith.constant 5.000000e-01 : f32
    %19 = vector.broadcast %cst_18 : f32 to vector<2x8xf32>
    %20 = arith.mulf %19, %17 : vector<2x8xf32>
    %21 = math.exp %20 : vector<2x8xf32>
    %22 = arith.mulf %18, %21 : vector<2x8xf32>
    %23 = arith.addf %12, %22 : vector<2x8xf32>
    %c0_19 = arith.constant 0 : index
    %c0_20 = arith.constant 0 : index
    %24 = vector.load %arg8[%c0_19, %c0_20] : memref<8x256xf32, #tpu.memory_space<vmem>>, vector<8x256xf32>
    %cst_21 = arith.constant dense<0.000000e+00> : vector<2x256xf32>
    %25 = tpu.matmul %23, %24, %cst_21 {dimension_numbers = #tpu.dot_dimension_numbers<[1], [0], [0], [1], [0, 0, 1, 1], [], []>} : vector<2x8xf32>, vector<8x256xf32>, vector<2x256xf32> -> vector<2x256xf32>
    %c0_22 = arith.constant 0 : index
    %c0_23 = arith.constant 0 : index
    %26 = vector.load %arg9[%c0_22, %c0_23] : memref<1x256xf32, #tpu.memory_space<vmem>>, vector<1x256xf32>
    %27 = vector.broadcast %26 : vector<1x256xf32> to vector<2x256xf32>
    %28 = arith.addf %25, %27 : vector<2x256xf32>
    %cst_24 = arith.constant 0.000000e+00 : f32
    %29 = vector.broadcast %cst_24 : f32 to vector<2x256xf32>
    %30 = arith.maximumf %28, %29 : vector<2x256xf32>
    %c0_25 = arith.constant 0 : index
    %c0_26 = arith.constant 0 : index
    %31 = vector.load %arg10[%c0_25, %c0_26] : memref<2x8xf32, #tpu.memory_space<vmem>>, vector<2x8xf32>
    tpu.vector_store %arg10[%c0_25, %c0_26], %12 {strides = array<i32>} : memref<2x8xf32, #tpu.memory_space<vmem>>, vector<2x8xf32>,
    %c0_27 = arith.constant 0 : index
    %c0_28 = arith.constant 0 : index
    %32 = vector.load %arg11[%c0_27, %c0_28] : memref<2x8xf32, #tpu.memory_space<vmem>>, vector<2x8xf32>
    tpu.vector_store %arg11[%c0_27, %c0_28], %17 {strides = array<i32>} : memref<2x8xf32, #tpu.memory_space<vmem>>, vector<2x8xf32>,
    %c0_29 = arith.constant 0 : index
    %c0_30 = arith.constant 0 : index
    %33 = vector.load %arg12[%c0_29, %c0_30] : memref<2x256xf32, #tpu.memory_space<vmem>>, vector<2x256xf32>
    tpu.vector_store %arg12[%c0_29, %c0_30], %30 {strides = array<i32>} : memref<2x256xf32, #tpu.memory_space<vmem>>, vector<2x256xf32>,
    return
  }
}

module attributes {stable_mosaic.version = 11 : i64} {
  func.func @_mm_bias_act_kernel(%arg0: i32, %arg1: memref<32x64xf32, #tpu.memory_space<vmem>>, %arg2: memref<64x64xf32, #tpu.memory_space<vmem>>, %arg3: memref<1x64xf32, #tpu.memory_space<vmem>>, %arg4: memref<32x64xf32, #tpu.memory_space<vmem>>) attributes {dimension_semantics = [#tpu.dimension_semantics<parallel>], iteration_bounds = array<i64: 1>, scalar_prefetch = 0 : i64, scratch_operands = 0 : i64, tpu.core_type = #tpu.core_type<tc>, window_params = [{transform_indices = @transform_0, window_bounds = array<i64: 32, 64>}, {pipeline_mode = #tpu.pipeline_mode<synchronous>, transform_indices = @transform_1, window_bounds = array<i64: 64, 64>}, {pipeline_mode = #tpu.pipeline_mode<synchronous>, transform_indices = @transform_2, window_bounds = array<i64: 1, 64>}, {transform_indices = @transform_3, window_bounds = array<i64: 32, 64>}]} {
    %c0 = arith.constant 0 : index
    %c0_0 = arith.constant 0 : index
    %0 = vector.load %arg1[%c0, %c0_0] : memref<32x64xf32, #tpu.memory_space<vmem>>, vector<32x64xf32>
    %c0_1 = arith.constant 0 : index
    %c0_2 = arith.constant 0 : index
    %1 = vector.load %arg2[%c0_1, %c0_2] : memref<64x64xf32, #tpu.memory_space<vmem>>, vector<64x64xf32>
    %2 = arith.truncf %0 : vector<32x64xf32> to vector<32x64xbf16>
    %3 = arith.truncf %1 : vector<64x64xf32> to vector<64x64xbf16>
    %cst = arith.constant dense<0.000000e+00> : vector<32x64xf32>
    %4 = tpu.matmul %2, %3, %cst {dimension_numbers = #tpu.dot_dimension_numbers<[1], [0], [0], [1], [0, 0, 1, 1], [], []>} : vector<32x64xbf16>, vector<64x64xbf16>, vector<32x64xf32> -> vector<32x64xf32>
    %c0_3 = arith.constant 0 : index
    %c0_4 = arith.constant 0 : index
    %5 = vector.load %arg3[%c0_3, %c0_4] : memref<1x64xf32, #tpu.memory_space<vmem>>, vector<1x64xf32>
    %6 = vector.broadcast %5 : vector<1x64xf32> to vector<32x64xf32>
    %7 = arith.addf %4, %6 : vector<32x64xf32>
    %cst_5 = arith.constant 0.000000e+00 : f32
    %8 = vector.broadcast %cst_5 : f32 to vector<32x64xf32>
    %9 = arith.maximumf %7, %8 : vector<32x64xf32>
    %c0_6 = arith.constant 0 : index
    %c0_7 = arith.constant 0 : index
    %10 = vector.load %arg4[%c0_6, %c0_7] : memref<32x64xf32, #tpu.memory_space<vmem>>, vector<32x64xf32>
    tpu.vector_store %arg4[%c0_6, %c0_7], %9 {strides = array<i32>} : memref<32x64xf32, #tpu.memory_space<vmem>>, vector<32x64xf32>,
    return
  }
  func.func @transform_0(%arg0: i32) -> (i32, i32) {
    %c0_i32 = arith.constant 0 : i32
    %c0_i32_0 = arith.constant 0 : i32
    return %arg0, %c0_i32 : i32, i32
  }
  func.func @transform_1(%arg0: i32) -> (i32, i32) {
    %c0_i32 = arith.constant 0 : i32
    %c0_i32_0 = arith.constant 0 : i32
    %c0_i32_1 = arith.constant 0 : i32
    return %c0_i32, %c0_i32_0 : i32, i32
  }
  func.func @transform_2(%arg0: i32) -> (i32, i32) {
    %c0_i32 = arith.constant 0 : i32
    %c0_i32_0 = arith.constant 0 : i32
    %c0_i32_1 = arith.constant 0 : i32
    return %c0_i32, %c0_i32_0 : i32, i32
  }
  func.func @transform_3(%arg0: i32) -> (i32, i32) {
    %c0_i32 = arith.constant 0 : i32
    %c0_i32_0 = arith.constant 0 : i32
    return %arg0, %c0_i32 : i32, i32
  }
}

module attributes {stable_mosaic.version = 11 : i64} {
  func.func @_mm_bias_act_kernel(%arg0: i32, %arg1: memref<128x64xf32, #tpu.memory_space<vmem>>, %arg2: memref<64x32xf32, #tpu.memory_space<vmem>>, %arg3: memref<1x32xf32, #tpu.memory_space<vmem>>, %arg4: memref<128x32xf32, #tpu.memory_space<vmem>>) attributes {dimension_semantics = [#tpu.dimension_semantics<parallel>], iteration_bounds = array<i64: 1>, scalar_prefetch = 0 : i64, scratch_operands = 0 : i64, tpu.core_type = #tpu.core_type<tc>, window_params = [{transform_indices = @transform_0, window_bounds = array<i64: 128, 64>}, {pipeline_mode = #tpu.pipeline_mode<synchronous>, transform_indices = @transform_1, window_bounds = array<i64: 64, 32>}, {pipeline_mode = #tpu.pipeline_mode<synchronous>, transform_indices = @transform_2, window_bounds = array<i64: 1, 32>}, {transform_indices = @transform_3, window_bounds = array<i64: 128, 32>}]} {
    %c0 = arith.constant 0 : index
    %c0_0 = arith.constant 0 : index
    %0 = vector.load %arg1[%c0, %c0_0] : memref<128x64xf32, #tpu.memory_space<vmem>>, vector<128x64xf32>
    %c0_1 = arith.constant 0 : index
    %c0_2 = arith.constant 0 : index
    %1 = vector.load %arg2[%c0_1, %c0_2] : memref<64x32xf32, #tpu.memory_space<vmem>>, vector<64x32xf32>
    %2 = arith.truncf %0 : vector<128x64xf32> to vector<128x64xbf16>
    %3 = arith.truncf %1 : vector<64x32xf32> to vector<64x32xbf16>
    %cst = arith.constant dense<0.000000e+00> : vector<128x32xf32>
    %4 = tpu.matmul %2, %3, %cst {dimension_numbers = #tpu.dot_dimension_numbers<[1], [0], [0], [1], [0, 0, 1, 1], [], []>} : vector<128x64xbf16>, vector<64x32xbf16>, vector<128x32xf32> -> vector<128x32xf32>
    %c0_3 = arith.constant 0 : index
    %c0_4 = arith.constant 0 : index
    %5 = vector.load %arg3[%c0_3, %c0_4] : memref<1x32xf32, #tpu.memory_space<vmem>>, vector<1x32xf32>
    %6 = vector.broadcast %5 : vector<1x32xf32> to vector<128x32xf32>
    %7 = arith.addf %4, %6 : vector<128x32xf32>
    %cst_5 = arith.constant 0.000000e+00 : f32
    %8 = vector.broadcast %cst_5 : f32 to vector<128x32xf32>
    %9 = arith.maximumf %7, %8 : vector<128x32xf32>
    %c0_6 = arith.constant 0 : index
    %c0_7 = arith.constant 0 : index
    %10 = vector.load %arg4[%c0_6, %c0_7] : memref<128x32xf32, #tpu.memory_space<vmem>>, vector<128x32xf32>
    tpu.vector_store %arg4[%c0_6, %c0_7], %9 {strides = array<i32>} : memref<128x32xf32, #tpu.memory_space<vmem>>, vector<128x32xf32>,
    return
  }
  func.func @transform_0(%arg0: i32) -> (i32, i32) {
    %c0_i32 = arith.constant 0 : i32
    %c0_i32_0 = arith.constant 0 : i32
    return %arg0, %c0_i32 : i32, i32
  }
  func.func @transform_1(%arg0: i32) -> (i32, i32) {
    %c0_i32 = arith.constant 0 : i32
    %c0_i32_0 = arith.constant 0 : i32
    %c0_i32_1 = arith.constant 0 : i32
    return %c0_i32, %c0_i32_0 : i32, i32
  }
  func.func @transform_2(%arg0: i32) -> (i32, i32) {
    %c0_i32 = arith.constant 0 : i32
    %c0_i32_0 = arith.constant 0 : i32
    %c0_i32_1 = arith.constant 0 : i32
    return %c0_i32, %c0_i32_0 : i32, i32
  }
  func.func @transform_3(%arg0: i32) -> (i32, i32) {
    %c0_i32 = arith.constant 0 : i32
    %c0_i32_0 = arith.constant 0 : i32
    return %arg0, %c0_i32 : i32, i32
  }
}

module attributes {stable_mosaic.version = 11 : i64} {
  func.func @_mm_bias_act_kernel(%arg0: i32, %arg1: memref<256x72xf32, #tpu.memory_space<vmem>>, %arg2: memref<72x4xf32, #tpu.memory_space<vmem>>, %arg3: memref<1x4xf32, #tpu.memory_space<vmem>>, %arg4: memref<256x4xf32, #tpu.memory_space<vmem>>) attributes {dimension_semantics = [#tpu.dimension_semantics<parallel>], iteration_bounds = array<i64: 2>, scalar_prefetch = 0 : i64, scratch_operands = 0 : i64, tpu.core_type = #tpu.core_type<tc>, window_params = [{transform_indices = @transform_0, window_bounds = array<i64: 256, 72>}, {pipeline_mode = #tpu.pipeline_mode<synchronous>, transform_indices = @transform_1, window_bounds = array<i64: 72, 4>}, {pipeline_mode = #tpu.pipeline_mode<synchronous>, transform_indices = @transform_2, window_bounds = array<i64: 1, 4>}, {transform_indices = @transform_3, window_bounds = array<i64: 256, 4>}]} {
    %c0 = arith.constant 0 : index
    %c0_0 = arith.constant 0 : index
    %0 = vector.load %arg1[%c0, %c0_0] : memref<256x72xf32, #tpu.memory_space<vmem>>, vector<256x72xf32>
    %c0_1 = arith.constant 0 : index
    %c0_2 = arith.constant 0 : index
    %1 = vector.load %arg2[%c0_1, %c0_2] : memref<72x4xf32, #tpu.memory_space<vmem>>, vector<72x4xf32>
    %2 = arith.truncf %0 : vector<256x72xf32> to vector<256x72xbf16>
    %3 = arith.truncf %1 : vector<72x4xf32> to vector<72x4xbf16>
    %cst = arith.constant dense<0.000000e+00> : vector<256x4xf32>
    %4 = tpu.matmul %2, %3, %cst {dimension_numbers = #tpu.dot_dimension_numbers<[1], [0], [0], [1], [0, 0, 1, 1], [], []>} : vector<256x72xbf16>, vector<72x4xbf16>, vector<256x4xf32> -> vector<256x4xf32>
    %c0_3 = arith.constant 0 : index
    %c0_4 = arith.constant 0 : index
    %5 = vector.load %arg3[%c0_3, %c0_4] : memref<1x4xf32, #tpu.memory_space<vmem>>, vector<1x4xf32>
    %6 = vector.broadcast %5 : vector<1x4xf32> to vector<256x4xf32>
    %7 = arith.addf %4, %6 : vector<256x4xf32>
    %8 = arith.negf %7 : vector<256x4xf32>
    %9 = math.exp %8 : vector<256x4xf32>
    %cst_5 = arith.constant 1.000000e+00 : f32
    %10 = vector.broadcast %cst_5 : f32 to vector<256x4xf32>
    %11 = arith.addf %10, %9 : vector<256x4xf32>
    %12 = arith.divf %10, %11 : vector<256x4xf32>
    %c0_6 = arith.constant 0 : index
    %c0_7 = arith.constant 0 : index
    %13 = vector.load %arg4[%c0_6, %c0_7] : memref<256x4xf32, #tpu.memory_space<vmem>>, vector<256x4xf32>
    tpu.vector_store %arg4[%c0_6, %c0_7], %12 {strides = array<i32>} : memref<256x4xf32, #tpu.memory_space<vmem>>, vector<256x4xf32>,
    return
  }
  func.func @transform_0(%arg0: i32) -> (i32, i32) {
    %c0_i32 = arith.constant 0 : i32
    %c0_i32_0 = arith.constant 0 : i32
    return %arg0, %c0_i32 : i32, i32
  }
  func.func @transform_1(%arg0: i32) -> (i32, i32) {
    %c0_i32 = arith.constant 0 : i32
    %c0_i32_0 = arith.constant 0 : i32
    %c0_i32_1 = arith.constant 0 : i32
    return %c0_i32, %c0_i32_0 : i32, i32
  }
  func.func @transform_2(%arg0: i32) -> (i32, i32) {
    %c0_i32 = arith.constant 0 : i32
    %c0_i32_0 = arith.constant 0 : i32
    %c0_i32_1 = arith.constant 0 : i32
    return %c0_i32, %c0_i32_0 : i32, i32
  }
  func.func @transform_3(%arg0: i32) -> (i32, i32) {
    %c0_i32 = arith.constant 0 : i32
    %c0_i32_0 = arith.constant 0 : i32
    return %arg0, %c0_i32 : i32, i32
  }
}

</mosaic_0001>

<llo_original>
// kernel: vae_forward.6
$region0: #{vae_forward.6}
  #allocation0 [shape = 'u32[]', space=smem, size = 0x4, offset = 0x4, fixed_abs, tag = 'smem constant byte address 0x4 - core index']
  #allocation1 [shape = 'u32[144,128]{1,0:T(1,128)}', space=vmem, size = 0x12000, scoped, tag = 'internal scratch']
  %s0 = inlined_call_operand.vmem [shape: f32[128,36], index: 0, kind: input, shape index: {}]
  %s1 = inlined_call_operand.vmem [shape: f32[36,8], index: 1, kind: input, shape index: {}]
  %s2 = inlined_call_operand.vmem [shape: f32[1,8], index: 2, kind: input, shape index: {}]
  %s3 = inlined_call_operand.vmem [shape: f32[128,8], index: 3, kind: output, shape index: {}]
  %s4 = sld [smem:[#allocation0]]
  $region22: #{vae_forward.6} parent=0
    _
  %s6 = ssub.s32 1, %s4
  %s7 = scalar_select 0, %s6, %s4
  // Predicated region
  $region2: #{vae_forward.6} parent=0 // pred_check
    _
  $region3: #{vae_forward.6} parent=0 // pred_check_branch
    %9 = sbr.rel (0) target = $region5
  $region4: #{vae_forward.6} parent=0 // pred_region
    _
  $region5: #{vae_forward.6} parent=0 // pred_fallthru
    _
  // Predicated region
  $region6: #{vae_forward.6} parent=0 // pred_check
    _
  $region7: #{vae_forward.6} parent=0 // pred_check_branch
    %11 = sbr.rel (0) target = $region9
  $region8: #{vae_forward.6} parent=0 // pred_region
    _
  $region9: #{vae_forward.6} parent=0 // pred_fallthru
    _
  // Predicated region
  $region10: #{vae_forward.6} parent=0 // pred_check
    _
  $region11: #{vae_forward.6} parent=0 // pred_check_branch
    %13 = sbr.rel (0) target = $region13
  $region12: #{vae_forward.6} parent=0 // pred_region
    _
  $region13: #{vae_forward.6} parent=0 // pred_fallthru
    _
  %v15 = vld [vmem:[%s0] sm:$0xff]
  %v16 = vld [vmem:[%s0 + $0x8] sm:$0xff]
  %v17 = vld [vmem:[%s0 + $0x10] sm:$0xff]
  %v18 = vld [vmem:[%s0 + $0x18] sm:$0xff]
  %v19 = vld [vmem:[%s0 + $0x20] sm:$0xff]
  %v20 = vld [vmem:[%s0 + $0x28] sm:$0xff]
  %v21 = vld [vmem:[%s0 + $0x30] sm:$0xff]
  %v22 = vld [vmem:[%s0 + $0x38] sm:$0xff]
  %v23 = vld [vmem:[%s0 + $0x40] sm:$0xff]
  %v24 = vld [vmem:[%s0 + $0x48] sm:$0xff]
  %v25 = vld [vmem:[%s0 + $0x50] sm:$0xff]
  %v26 = vld [vmem:[%s0 + $0x58] sm:$0xff]
  %v27 = vld [vmem:[%s0 + $0x60] sm:$0xff]
  %v28 = vld [vmem:[%s0 + $0x68] sm:$0xff]
  %v29 = vld [vmem:[%s0 + $0x70] sm:$0xff]
  %v30 = vld [vmem:[%s0 + $0x78] sm:$0xff]
  %v31 = vld [vmem:[%s1] sm:$0xff]
  %v32 = vld [vmem:[%s1 + $0x8] sm:$0xff]
  %v33 = vld [vmem:[%s1 + $0x10] sm:$0xff]
  %v34 = vld [vmem:[%s1 + $0x18] sm:$0xff]
  %v35 = vld [vmem:[%s1 + $0x20] sm:$0xf]
  %v36 = vpack.c.bf16 %v16, %v15
  %v37 = vpack.c.bf16 %v18, %v17
  %v38 = vpack.c.bf16 %v20, %v19
  %v39 = vpack.c.bf16 %v22, %v21
  %v40 = vpack.c.bf16 %v24, %v23
  %v41 = vpack.c.bf16 %v26, %v25
  %v42 = vpack.c.bf16 %v28, %v27
  %v43 = vpack.c.bf16 %v30, %v29
  %v44 = vpack.c.bf16 %v32, %v31
  %v45 = vpack.c.bf16 %v34, %v33
  %v46 = vpack.c.bf16 %v35, %v35
  %v47 = vld [vmem:[%s2] sm:$0x1]
  %v49 = vlaneseq
  %v50 = vshrl.u32 %v49, 7
  %v51 = vsub.s32 0, %v50
  %v52 = vrot.slane %v47, %v51
  %vm54 = vcmask 293888
  %v56 = vsel %vm54, %v36, 0
  %v59 = vsel %vm54, %v37, 0
  %v62 = vsel %vm54, %v38, 0
  %v65 = vsel %vm54, %v39, 0
  %v68 = vsel %vm54, %v40, 0
  %v71 = vsel %vm54, %v41, 0
  %v74 = vsel %vm54, %v42, 0
  %v77 = vsel %vm54, %v43, 0
  %vm79 = vcmask 1041408
  %v81 = vsel %vm79, %v46, 0
  %83 = vmatprep.subr.bf16.mxu0 0
  %84 = vmatpush1.bf16.msra.mxu0 %v44
  %85 = vmatprep.subr.bf16.mxu0 0
  %86 = vmatpush1.bf16.msra.mxu0 %v45
  %87 = vmatprep.subr.bf16.mxu0 0
  %88 = vmatpush1.bf16.msra.mxu0 %v81
  %89 = vmatprep.subr.bf16.mxu0 0
  %90 = vmatpush1.bf16.msra.mxu0 0
  %91 = vmatprep.subr.bf16.mxu0 0
  %92 = vmatpush1.bf16.msra.mxu0 0
  %93 = vmatprep.subr.bf16.mxu0 0
  %94 = vmatpush1.bf16.msra.mxu0 0
  %95 = vmatprep.subr.bf16.mxu0 0
  %96 = vmatpush1.bf16.msra.mxu0 0
  %97 = vmatprep.subr.bf16.mxu0 0
  %98 = vmatpush1.bf16.msra.mxu0 0
  %99 = vmatprep.subr.bf16.mxu0 0
  %100 = vmatpush1.bf16.msra.mxu0 0
  %101 = vmatprep.subr.bf16.mxu0 0
  %102 = vmatpush1.bf16.msra.mxu0 0
  %103 = vmatprep.subr.bf16.mxu0 0
  %104 = vmatpush1.bf16.msra.mxu0 0
  %105 = vmatprep.subr.bf16.mxu0 0
  %106 = vmatpush1.bf16.msra.mxu0 0
  %107 = vmatprep.subr.bf16.mxu0 0
  %108 = vmatpush1.bf16.msra.mxu0 0
  %109 = vmatprep.subr.bf16.mxu0 0
  %110 = vmatpush1.bf16.msra.mxu0 0
  %111 = vmatprep.subr.bf16.mxu0 0
  %112 = vmatpush1.bf16.msra.mxu0 0
  %113 = vmatprep.subr.bf16.mxu0 0
  %114 = vmatpush1.bf16.msra.mxu0 0
  %115 = vmatprep.mubr.bf16.mxu0 0
  %116 = vmatmul.mubr.bf16.gmra.mrb[0].mxu0 %v56
  %v117 = vpop.f32.mrb[0].mxu0
  %v118 = vadd.f32 %v52, %v117
  %v119 = vpop.f32.mrb[0].mxu0
  %v120 = vpop.f32.mrb[0].mxu0
  %v121 = vadd.f32 %v52, %v120
  %v122 = vpop.f32.mrb[0].mxu0
  %123 = vmatprep.mubr.bf16.mxu0 0
  %124 = vmatmul.mubr.bf16.gmra.mrb[0].mxu0 %v59
  %v125 = vpop.f32.mrb[0].mxu0
  %v126 = vadd.f32 %v52, %v125
  %v127 = vpop.f32.mrb[0].mxu0
  %v128 = vpop.f32.mrb[0].mxu0
  %v129 = vadd.f32 %v52, %v128
  %v130 = vpop.f32.mrb[0].mxu0
  %131 = vmatprep.mubr.bf16.mxu0 0
  %132 = vmatmul.mubr.bf16.gmra.mrb[0].mxu0 %v62
  %v133 = vpop.f32.mrb[0].mxu0
  %v134 = vadd.f32 %v52, %v133
  %v135 = vpop.f32.mrb[0].mxu0
  %v136 = vpop.f32.mrb[0].mxu0
  %v137 = vadd.f32 %v52, %v136
  %v138 = vpop.f32.mrb[0].mxu0
  %139 = vmatprep.mubr.bf16.mxu0 0
  %140 = vmatmul.mubr.bf16.gmra.mrb[0].mxu0 %v65
  %v141 = vpop.f32.mrb[0].mxu0
  %v142 = vadd.f32 %v52, %v141
  %v143 = vpop.f32.mrb[0].mxu0
  %v144 = vpop.f32.mrb[0].mxu0
  %v145 = vadd.f32 %v52, %v144
  %v146 = vpop.f32.mrb[0].mxu0
  %147 = vmatprep.mubr.bf16.mxu0 0
  %148 = vmatmul.mubr.bf16.gmra.mrb[0].mxu0 %v68
  %v149 = vpop.f32.mrb[0].mxu0
  %v150 = vadd.f32 %v52, %v149
  %v151 = vpop.f32.mrb[0].mxu0
  %v152 = vpop.f32.mrb[0].mxu0
  %v153 = vadd.f32 %v52, %v152
  %v154 = vpop.f32.mrb[0].mxu0
  %155 = vmatprep.mubr.bf16.mxu0 0
  %156 = vmatmul.mubr.bf16.gmra.mrb[0].mxu0 %v71
  %v157 = vpop.f32.mrb[0].mxu0
  %v158 = vadd.f32 %v52, %v157
  %v159 = vpop.f32.mrb[0].mxu0
  %v160 = vpop.f32.mrb[0].mxu0
  %v161 = vadd.f32 %v52, %v160
  %v162 = vpop.f32.mrb[0].mxu0
  %163 = vmatprep.mubr.bf16.mxu0 0
  %164 = vmatmul.mubr.bf16.gmra.mrb[0].mxu0 %v74
  %v165 = vpop.f32.mrb[0].mxu0
  %v166 = vadd.f32 %v52, %v165
  %v167 = vpop.f32.mrb[0].mxu0
  %v168 = vpop.f32.mrb[0].mxu0
  %v169 = vadd.f32 %v52, %v168
  %v170 = vpop.f32.mrb[0].mxu0
  %171 = vmatprep.mubr.bf16.mxu0 0
  %172 = vmatmul.mubr.bf16.gmra.mrb[0].mxu0 %v77
  %v173 = vpop.f32.mrb[0].mxu0
  %v174 = vadd.f32 %v52, %v173
  %v175 = vpop.f32.mrb[0].mxu0
  %v176 = vpop.f32.mrb[0].mxu0
  %v177 = vadd.f32 %v52, %v176
  %v178 = vpop.f32.mrb[0].mxu0
  %179 = vdwg.mxu0
  %v180 = vmax.f32 %v118, 0.0
  %v181 = vmax.f32 %v121, 0.0
  %v182 = vmax.f32 %v126, 0.0
  %v183 = vmax.f32 %v129, 0.0
  %v184 = vmax.f32 %v134, 0.0
  %v185 = vmax.f32 %v137, 0.0
  %v186 = vmax.f32 %v142, 0.0
  %v187 = vmax.f32 %v145, 0.0
  %v188 = vmax.f32 %v150, 0.0
  %v189 = vmax.f32 %v153, 0.0
  %v190 = vmax.f32 %v158, 0.0
  %v191 = vmax.f32 %v161, 0.0
  %v192 = vmax.f32 %v166, 0.0
  %v193 = vmax.f32 %v169, 0.0
  %v194 = vmax.f32 %v174, 0.0
  %v195 = vmax.f32 %v177, 0.0
  %vm196 = vcmask 64512
  %197 = vst.msk [vmem:[%s3] sm:$0xff] %vm196, %v180
  %198 = vst.msk [vmem:[%s3 + $0x8] sm:$0xff] %vm196, %v181
  %199 = vst.msk [vmem:[%s3 + $0x10] sm:$0xff] %vm196, %v182
  %200 = vst.msk [vmem:[%s3 + $0x18] sm:$0xff] %vm196, %v183
  %201 = vst.msk [vmem:[%s3 + $0x20] sm:$0xff] %vm196, %v184
  %202 = vst.msk [vmem:[%s3 + $0x28] sm:$0xff] %vm196, %v185
  %203 = vst.msk [vmem:[%s3 + $0x30] sm:$0xff] %vm196, %v186
  %204 = vst.msk [vmem:[%s3 + $0x38] sm:$0xff] %vm196, %v187
  %205 = vst.msk [vmem:[%s3 + $0x40] sm:$0xff] %vm196, %v188
  %206 = vst.msk [vmem:[%s3 + $0x48] sm:$0xff] %vm196, %v189
  %207 = vst.msk [vmem:[%s3 + $0x50] sm:$0xff] %vm196, %v190
  %208 = vst.msk [vmem:[%s3 + $0x58] sm:$0xff] %vm196, %v191
  %209 = vst.msk [vmem:[%s3 + $0x60] sm:$0xff] %vm196, %v192
  %210 = vst.msk [vmem:[%s3 + $0x68] sm:$0xff] %vm196, %v193
  %211 = vst.msk [vmem:[%s3 + $0x70] sm:$0xff] %vm196, %v194
  %212 = vst.msk [vmem:[%s3 + $0x78] sm:$0xff] %vm196, %v195
  // Predicated region
  $region14: #{vae_forward.6} parent=0 // pred_check
    _
  $region15: #{vae_forward.6} parent=0 // pred_check_branch
    %214 = sbr.rel (0) target = $region17
  $region16: #{vae_forward.6} parent=0 // pred_region
    _
  $region17: #{vae_forward.6} parent=0 // pred_fallthru
    _
  // Predicated region
  $region18: #{vae_forward.6} parent=0 // pred_check
    _
  $region19: #{vae_forward.6} parent=0 // pred_check_branch
    %216 = sbr.rel (0) target = $region21
  $region20: #{vae_forward.6} parent=0 // pred_region
    _
  $region21: #{vae_forward.6} parent=0 // pred_fallthru
    _

// kernel: vae_forward.7
$region0: #{vae_forward.7}
  #allocation0 [shape = 'u32[]', space=smem, size = 0x4, offset = 0x4, fixed_abs, tag = 'smem constant byte address 0x4 - core index']
  #allocation1 [shape = 'u32[144,128]{1,0:T(1,128)}', space=vmem, size = 0x12000, scoped, tag = 'internal scratch']
  %s0 = inlined_call_operand.vmem [shape: f32[32,72], index: 0, kind: input, shape index: {}]
  %s1 = inlined_call_operand.vmem [shape: f32[72,16], index: 1, kind: input, shape index: {}]
  %s2 = inlined_call_operand.vmem [shape: f32[1,16], index: 2, kind: input, shape index: {}]
  %s3 = inlined_call_operand.vmem [shape: f32[32,16], index: 3, kind: output, shape index: {}]
  %s4 = sld [smem:[#allocation0]]
  $region22: #{vae_forward.7} parent=0
    _
  %s6 = ssub.s32 1, %s4
  %s7 = scalar_select 0, %s6, %s4
  // Predicated region
  $region2: #{vae_forward.7} parent=0 // pred_check
    _
  $region3: #{vae_forward.7} parent=0 // pred_check_branch
    %9 = sbr.rel (0) target = $region5
  $region4: #{vae_forward.7} parent=0 // pred_region
    _
  $region5: #{vae_forward.7} parent=0 // pred_fallthru
    _
  // Predicated region
  $region6: #{vae_forward.7} parent=0 // pred_check
    _
  $region7: #{vae_forward.7} parent=0 // pred_check_branch
    %11 = sbr.rel (0) target = $region9
  $region8: #{vae_forward.7} parent=0 // pred_region
    _
  $region9: #{vae_forward.7} parent=0 // pred_fallthru
    _
  // Predicated region
  $region10: #{vae_forward.7} parent=0 // pred_check
    _
  $region11: #{vae_forward.7} parent=0 // pred_check_branch
    %13 = sbr.rel (0) target = $region13
  $region12: #{vae_forward.7} parent=0 // pred_region
    _
  $region13: #{vae_forward.7} parent=0 // pred_fallthru
    _
  %v15 = vld [vmem:[%s0] sm:$0xff]
  %v16 = vld [vmem:[%s0 + $0x8] sm:$0xff]
  %v17 = vld [vmem:[%s0 + $0x10] sm:$0xff]
  %v18 = vld [vmem:[%s0 + $0x18] sm:$0xff]
  %v19 = vld [vmem:[%s1] sm:$0xff]
  %v20 = vld [vmem:[%s1 + $0x8] sm:$0xff]
  %v21 = vld [vmem:[%s1 + $0x10] sm:$0xff]
  %v22 = vld [vmem:[%s1 + $0x18] sm:$0xff]
  %v23 = vld [vmem:[%s1 + $0x20] sm:$0xff]
  %v24 = vld [vmem:[%s1 + $0x28] sm:$0xff]
  %v25 = vld [vmem:[%s1 + $0x30] sm:$0xff]
  %v26 = vld [vmem:[%s1 + $0x38] sm:$0xff]
  %v27 = vld [vmem:[%s1 + $0x40] sm:$0xff]
  %v28 = vpack.c.bf16 %v16, %v15
  %v29 = vpack.c.bf16 %v18, %v17
  %v30 = vpack.c.bf16 %v20, %v19
  %v31 = vpack.c.bf16 %v22, %v21
  %v32 = vpack.c.bf16 %v24, %v23
  %v33 = vpack.c.bf16 %v26, %v25
  %v34 = vpack.c.bf16 %v27, %v27
  %v35 = vld [vmem:[%s2] sm:$0x1]
  %v37 = vlaneseq
  %v38 = vshrl.u32 %v37, 7
  %v39 = vsub.s32 0, %v38
  %v40 = vrot.slane %v35, %v39
  %vm42 = vcmask 588800
  %v44 = vsel %vm42, %v28, 0
  %v47 = vsel %vm42, %v29, 0
  %vm49 = vcmask 1043456
  %v51 = vsel %vm49, %v34, 0
  %53 = vmatprep.subr.bf16.mxu0 0
  %54 = vmatpush1.bf16.msra.mxu0 %v30
  %55 = vmatprep.subr.bf16.mxu0 0
  %56 = vmatpush1.bf16.msra.mxu0 %v31
  %57 = vmatprep.subr.bf16.mxu0 0
  %58 = vmatpush1.bf16.msra.mxu0 %v32
  %59 = vmatprep.subr.bf16.mxu0 0
  %60 = vmatpush1.bf16.msra.mxu0 %v33
  %61 = vmatprep.subr.bf16.mxu0 0
  %62 = vmatpush1.bf16.msra.mxu0 %v51
  %63 = vmatprep.subr.bf16.mxu0 0
  %64 = vmatpush1.bf16.msra.mxu0 0
  %65 = vmatprep.subr.bf16.mxu0 0
  %66 = vmatpush1.bf16.msra.mxu0 0
  %67 = vmatprep.subr.bf16.mxu0 0
  %68 = vmatpush1.bf16.msra.mxu0 0
  %69 = vmatprep.subr.bf16.mxu0 0
  %70 = vmatpush1.bf16.msra.mxu0 0
  %71 = vmatprep.subr.bf16.mxu0 0
  %72 = vmatpush1.bf16.msra.mxu0 0
  %73 = vmatprep.subr.bf16.mxu0 0
  %74 = vmatpush1.bf16.msra.mxu0 0
  %75 = vmatprep.subr.bf16.mxu0 0
  %76 = vmatpush1.bf16.msra.mxu0 0
  %77 = vmatprep.subr.bf16.mxu0 0
  %78 = vmatpush1.bf16.msra.mxu0 0
  %79 = vmatprep.subr.bf16.mxu0 0
  %80 = vmatpush1.bf16.msra.mxu0 0
  %81 = vmatprep.subr.bf16.mxu0 0
  %82 = vmatpush1.bf16.msra.mxu0 0
  %83 = vmatprep.subr.bf16.mxu0 0
  %84 = vmatpush1.bf16.msra.mxu0 0
  %85 = vmatprep.mubr.bf16.mxu0 0
  %86 = vmatmul.mubr.bf16.gmra.mrb[0].mxu0 %v44
  %v87 = vpop.f32.mrb[0].mxu0
  %v88 = vadd.f32 %v40, %v87
  %v89 = vpop.f32.mrb[0].mxu0
  %v90 = vpop.f32.mrb[0].mxu0
  %v91 = vadd.f32 %v40, %v90
  %v92 = vpop.f32.mrb[0].mxu0
  %93 = vmatprep.mubr.bf16.mxu0 0
  %94 = vmatmul.mubr.bf16.gmra.mrb[0].mxu0 %v47
  %v95 = vpop.f32.mrb[0].mxu0
  %v96 = vadd.f32 %v40, %v95
  %v97 = vpop.f32.mrb[0].mxu0
  %v98 = vpop.f32.mrb[0].mxu0
  %v99 = vadd.f32 %v40, %v98
  %v100 = vpop.f32.mrb[0].mxu0
  %101 = vdwg.mxu0
  %v102 = vmax.f32 %v88, 0.0
  %v103 = vmax.f32 %v91, 0.0
  %v104 = vmax.f32 %v96, 0.0
  %v105 = vmax.f32 %v99, 0.0
  %vm106 = vcmask 130048
  %107 = vst.msk [vmem:[%s3] sm:$0xff] %vm106, %v102
  %108 = vst.msk [vmem:[%s3 + $0x8] sm:$0xff] %vm106, %v103
  %109 = vst.msk [vmem:[%s3 + $0x10] sm:$0xff] %vm106, %v104
  %110 = vst.msk [vmem:[%s3 + $0x18] sm:$0xff] %vm106, %v105
  // Predicated region
  $region14: #{vae_forward.7} parent=0 // pred_check
    _
  $region15: #{vae_forward.7} parent=0 // pred_check_branch
    %112 = sbr.rel (0) target = $region17
  $region16: #{vae_forward.7} parent=0 // pred_region
    _
  $region17: #{vae_forward.7} parent=0 // pred_fallthru
    _
  // Predicated region
  $region18: #{vae_forward.7} parent=0 // pred_check
    _
  $region19: #{vae_forward.7} parent=0 // pred_check_branch
    %114 = sbr.rel (0) target = $region21
  $region20: #{vae_forward.7} parent=0 // pred_region
    _
  $region21: #{vae_forward.7} parent=0 // pred_fallthru
    _

// kernel: vae_forward.8
$region0: #{vae_forward.8}
  #allocation0 [shape = 'u32[]', space=smem, size = 0x4, offset = 0x4, fixed_abs, tag = 'smem constant byte address 0x4 - core index']
  #allocation1 [shape = 'u32[144,128]{1,0:T(1,128)}', space=vmem, size = 0x12000, scoped, tag = 'internal scratch']
  %s0 = inlined_call_operand.vmem [shape: f32[2,256], index: 0, kind: input, shape index: {}]
  %s1 = inlined_call_operand.vmem [shape: f32[256,32], index: 1, kind: input, shape index: {}]
  %s2 = inlined_call_operand.vmem [shape: f32[1,32], index: 2, kind: input, shape index: {}]
  %s3 = inlined_call_operand.vmem [shape: f32[32,8], index: 3, kind: input, shape index: {}]
  %s4 = inlined_call_operand.vmem [shape: f32[1,8], index: 4, kind: input, shape index: {}]
  %s5 = inlined_call_operand.vmem [shape: f32[32,8], index: 5, kind: input, shape index: {}]
  %s6 = inlined_call_operand.vmem [shape: f32[1,8], index: 6, kind: input, shape index: {}]
  %s7 = inlined_call_operand.vmem [shape: f32[2,8], index: 7, kind: input, shape index: {}]
  %s8 = inlined_call_operand.vmem [shape: f32[8,256], index: 8, kind: input, shape index: {}]
  %s9 = inlined_call_operand.vmem [shape: f32[1,256], index: 9, kind: input, shape index: {}]
  %s10 = inlined_call_operand.hbm [shape: f32[2,8], index: 10, kind: output, shape index: {0}]
  %s11 = inlined_call_operand.hbm [shape: f32[2,8], index: 11, kind: output, shape index: {1}]
  %s12 = inlined_call_operand.vmem [shape: f32[2,256], index: 12, kind: output, shape index: {2}]
  %13 = xla_tuple %s10, %s11, %s12
  %s14 = sld [smem:[#allocation0]]
  $region66: #{vae_forward.8} parent=0
    _
  %s16 = ssub.s32 1, %s14
  %s17 = scalar_select 0, %s16, %s14
  $region1: #{vae_forward.8} parent=0
    #allocation2 [shape = 'u8[1024]{0}', space=vmem, size = 0x400, scoped, tag = 'output window, operand 0, single buffered']
    #allocation3 [shape = 's32[1]{0}', space=sflag, size = 0x4, scoped, tag = 'scoped memory for vae_forward.8']
    #allocation4 [shape = 'u8[1024]{0}', space=vmem, size = 0x400, scoped, tag = 'output window, operand 1, single buffered']
    #allocation5 [shape = 's32[1]{0}', space=sflag, size = 0x4, scoped, tag = 'scoped memory for vae_forward.8']
    %18 = vsyncpa [#allocation3], 0
    %19 = vsyncpa [#allocation5], 0
    // Predicated region
    $region2: #{vae_forward.8} parent=1 // pred_check
      _
    $region3: #{vae_forward.8} parent=1 // pred_check_branch
      %21 = sbr.rel (0) target = $region5
    $region4: #{vae_forward.8} parent=1 // pred_region
      _
    $region5: #{vae_forward.8} parent=1 // pred_fallthru
      _
    // Predicated region
    $region6: #{vae_forward.8} parent=1 // pred_check
      _
    $region7: #{vae_forward.8} parent=1 // pred_check_branch
      %23 = sbr.rel (0) target = $region9
    $region8: #{vae_forward.8} parent=1 // pred_region
      _
    $region9: #{vae_forward.8} parent=1 // pred_fallthru
      _
    // Predicated region
    $region10: #{vae_forward.8} parent=1 // pred_check
      _
    $region11: #{vae_forward.8} parent=1 // pred_check_branch
      %25 = sbr.rel (0) target = $region13
    $region12: #{vae_forward.8} parent=1 // pred_region
      _
    $region13: #{vae_forward.8} parent=1 // pred_fallthru
      _
    // Predicated region
    $region14: #{vae_forward.8} parent=1 // pred_check
      _
    $region15: #{vae_forward.8} parent=1 // pred_check_branch
      %27 = sbr.rel (0) target = $region17
    $region16: #{vae_forward.8} parent=1 // pred_region
      _
    $region17: #{vae_forward.8} parent=1 // pred_fallthru
      _
    // Predicated region
    $region18: #{vae_forward.8} parent=1 // pred_check
      _
    $region19: #{vae_forward.8} parent=1 // pred_check_branch
      %29 = sbr.rel (0) target = $region21
    $region20: #{vae_forward.8} parent=1 // pred_region
      _
    $region21: #{vae_forward.8} parent=1 // pred_fallthru
      _
    // Predicated region
    $region22: #{vae_forward.8} parent=1 // pred_check
      _
    $region23: #{vae_forward.8} parent=1 // pred_check_branch
      %31 = sbr.rel (0) target = $region25
    $region24: #{vae_forward.8} parent=1 // pred_region
      _
    $region25: #{vae_forward.8} parent=1 // pred_fallthru
      _
    // Predicated region
    $region26: #{vae_forward.8} parent=1 // pred_check
      _
    $region27: #{vae_forward.8} parent=1 // pred_check_branch
      %33 = sbr.rel (0) target = $region29
    $region28: #{vae_forward.8} parent=1 // pred_region
      _
    $region29: #{vae_forward.8} parent=1 // pred_fallthru
      _
    // Predicated region
    $region30: #{vae_forward.8} parent=1 // pred_check
      _
    $region31: #{vae_forward.8} parent=1 // pred_check_branch
      %35 = sbr.rel (0) target = $region33
    $region32: #{vae_forward.8} parent=1 // pred_region
      _
    $region33: #{vae_forward.8} parent=1 // pred_fallthru
      _
    // Predicated region
    $region34: #{vae_forward.8} parent=1 // pred_check
      _
    $region35: #{vae_forward.8} parent=1 // pred_check_branch
      %37 = sbr.rel (0) target = $region37
    $region36: #{vae_forward.8} parent=1 // pred_region
      _
    $region37: #{vae_forward.8} parent=1 // pred_fallthru
      _
    // Predicated region
    $region38: #{vae_forward.8} parent=1 // pred_check
      _
    $region39: #{vae_forward.8} parent=1 // pred_check_branch
      %39 = sbr.rel (0) target = $region41
    $region40: #{vae_forward.8} parent=1 // pred_region
      _
    $region41: #{vae_forward.8} parent=1 // pred_fallthru
      _
    %v40 = vld [vmem:[%s0] sm:$0xf]
    %v41 = vld [vmem:[%s1] sm:$0xff]
    %v42 = vld [vmem:[%s1 + $0x8] sm:$0xff]
    %v43 = vld [vmem:[%s1 + $0x10] sm:$0xff]
    %v44 = vld [vmem:[%s1 + $0x18] sm:$0xff]
    %v45 = vld [vmem:[%s1 + $0x20] sm:$0xff]
    %v46 = vld [vmem:[%s1 + $0x28] sm:$0xff]
    %v47 = vld [vmem:[%s1 + $0x30] sm:$0xff]
    %v48 = vld [vmem:[%s1 + $0x38] sm:$0xff]
    %v49 = vld [vmem:[%s1 + $0x40] sm:$0xff]
    %v50 = vld [vmem:[%s1 + $0x48] sm:$0xff]
    %v51 = vld [vmem:[%s1 + $0x50] sm:$0xff]
    %v52 = vld [vmem:[%s1 + $0x58] sm:$0xff]
    %v53 = vld [vmem:[%s1 + $0x60] sm:$0xff]
    %v54 = vld [vmem:[%s1 + $0x68] sm:$0xff]
    %v55 = vld [vmem:[%s1 + $0x70] sm:$0xff]
    %v56 = vld [vmem:[%s1 + $0x78] sm:$0xff]
    %v57 = vld [vmem:[%s1 + $0x80] sm:$0xff]
    %v58 = vld [vmem:[%s1 + $0x88] sm:$0xff]
    %v59 = vld [vmem:[%s1 + $0x90] sm:$0xff]
    %v60 = vld [vmem:[%s1 + $0x98] sm:$0xff]
    %v61 = vld [vmem:[%s1 + $0xa0] sm:$0xff]
    %v62 = vld [vmem:[%s1 + $0xa8] sm:$0xff]
    %v63 = vld [vmem:[%s1 + $0xb0] sm:$0xff]
    %v64 = vld [vmem:[%s1 + $0xb8] sm:$0xff]
    %v65 = vld [vmem:[%s1 + $0xc0] sm:$0xff]
    %v66 = vld [vmem:[%s1 + $0xc8] sm:$0xff]
    %v67 = vld [vmem:[%s1 + $0xd0] sm:$0xff]
    %v68 = vld [vmem:[%s1 + $0xd8] sm:$0xff]
    %v69 = vld [vmem:[%s1 + $0xe0] sm:$0xff]
    %v70 = vld [vmem:[%s1 + $0xe8] sm:$0xff]
    %v71 = vld [vmem:[%s1 + $0xf0] sm:$0xff]
    %v72 = vld [vmem:[%s1 + $0xf8] sm:$0xff]
    %v73 = vld [vmem:[%s2] sm:$0x1]
    %v75 = vlaneseq
    %v76 = vshrl.u32 %v75, 7
    %v77 = vsub.s32 0, %v76
    %v78 = vrot.slane %v73, %v77
    %v82 = vunpack.c.l.s4 1983009808
    %v83 = vunpack.c.0.s8 %v82
    %v84 = vlaneseq
    %v85 = vshrl.u32 %v84, 7
    %v86 = vsub.s32 %v83, %v85
    %v87 = vrot.slane %v40, %v86
    %v88 = vcombine.high %v87, %v87
    %91 = vmatprep.subr.mxu0 0.0
    %92 = vmatpush1.msra.mxu0 %v41
    %93 = vmatprep.subr.mxu0 0.0
    %94 = vmatpush1.msra.mxu0 %v42
    %95 = vmatprep.subr.mxu0 0.0
    %96 = vmatpush1.msra.mxu0 %v43
    %97 = vmatprep.subr.mxu0 0.0
    %98 = vmatpush1.msra.mxu0 %v44
    %99 = vmatprep.subr.mxu0 0.0
    %100 = vmatpush1.msra.mxu0 %v45
    %101 = vmatprep.subr.mxu0 0.0
    %102 = vmatpush1.msra.mxu0 %v46
    %103 = vmatprep.subr.mxu0 0.0
    %104 = vmatpush1.msra.mxu0 %v47
    %105 = vmatprep.subr.mxu0 0.0
    %106 = vmatpush1.msra.mxu0 %v48
    %107 = vmatprep.subr.mxu0 0.0
    %108 = vmatpush1.msra.mxu0 %v49
    %109 = vmatprep.subr.mxu0 0.0
    %110 = vmatpush1.msra.mxu0 %v50
    %111 = vmatprep.subr.mxu0 0.0
    %112 = vmatpush1.msra.mxu0 %v51
    %113 = vmatprep.subr.mxu0 0.0
    %114 = vmatpush1.msra.mxu0 %v52
    %115 = vmatprep.subr.mxu0 0.0
    %116 = vmatpush1.msra.mxu0 %v53
    %117 = vmatprep.subr.mxu0 0.0
    %118 = vmatpush1.msra.mxu0 %v54
    %119 = vmatprep.subr.mxu0 0.0
    %120 = vmatpush1.msra.mxu0 %v55
    %121 = vmatprep.subr.mxu0 0.0
    %122 = vmatpush1.msra.mxu0 %v56
    %123 = vmatprep.subr.mxu0 0.0
    %124 = vmatpush1.msra.mxu0 %v57
    %125 = vmatprep.subr.mxu0 0.0
    %126 = vmatpush1.msra.mxu0 %v58
    %127 = vmatprep.subr.mxu0 0.0
    %128 = vmatpush1.msra.mxu0 %v59
    %129 = vmatprep.subr.mxu0 0.0
    %130 = vmatpush1.msra.mxu0 %v60
    %131 = vmatprep.subr.mxu0 0.0
    %132 = vmatpush1.msra.mxu0 %v61
    %133 = vmatprep.subr.mxu0 0.0
    %134 = vmatpush1.msra.mxu0 %v62
    %135 = vmatprep.subr.mxu0 0.0
    %136 = vmatpush1.msra.mxu0 %v63
    %137 = vmatprep.subr.mxu0 0.0
    %138 = vmatpush1.msra.mxu0 %v64
    %139 = vmatprep.subr.mxu0 0.0
    %140 = vmatpush1.msra.mxu0 %v65
    %141 = vmatprep.subr.mxu0 0.0
    %142 = vmatpush1.msra.mxu0 %v66
    %143 = vmatprep.subr.mxu0 0.0
    %144 = vmatpush1.msra.mxu0 %v67
    %145 = vmatprep.subr.mxu0 0.0
    %146 = vmatpush1.msra.mxu0 %v68
    %147 = vmatprep.subr.mxu0 0.0
    %148 = vmatpush1.msra.mxu0 %v69
    %149 = vmatprep.subr.mxu0 0.0
    %150 = vmatpush1.msra.mxu0 %v70
    %151 = vmatprep.subr.mxu0 0.0
    %152 = vmatpush1.msra.mxu0 %v71
    %153 = vmatprep.subr.mxu0 0.0
    %154 = vmatpush1.msra.mxu0 %v72
    %155 = vmatprep.mubr.f32.mxu0 %v88
    %156 = vmatmul.mubr.f32.gmra.mrb[0].mxu0 %v87
    %v157 = vpop.f32.mrb[0].mxu0
    %v158 = vadd.f32 %v78, %v157
    %v159 = vpop.f32.mrb[0].mxu0
    %160 = vdwg.mxu0
    %v161 = vmax.f32 %v158, 0.0
    %v162 = vld [vmem:[%s3] sm:$0xff]
    %v163 = vld [vmem:[%s3 + $0x8] sm:$0xff]
    %v164 = vld [vmem:[%s3 + $0x10] sm:$0xff]
    %v165 = vld [vmem:[%s3 + $0x18] sm:$0xff]
    %v166 = vld [vmem:[%s4] sm:$0x1]
    %v168 = vlaneseq
    %v169 = vshrl.u32 %v168, 7
    %v170 = vsub.s32 0, %v169
    %v171 = vrot.slane %v166, %v170
    %vm173 = vcmask 261120
    %v175 = vsel %vm173, %v161, 0
    %177 = vmatprep.subr.mxu0 0.0
    %178 = vmatpush1.msra.mxu0 %v162
    %179 = vmatprep.subr.mxu0 0.0
    %180 = vmatpush1.msra.mxu0 %v163
    %181 = vmatprep.subr.mxu0 0.0
    %182 = vmatpush1.msra.mxu0 %v164
    %183 = vmatprep.subr.mxu0 0.0
    %184 = vmatpush1.msra.mxu0 %v165
    %185 = vmatprep.subr.mxu0 0.0
    %186 = vmatpush1.msra.mxu0 0.0
    %187 = vmatprep.subr.mxu0 0.0
    %188 = vmatpush1.msra.mxu0 0.0
    %189 = vmatprep.subr.mxu0 0.0
    %190 = vmatpush1.msra.mxu0 0.0
    %191 = vmatprep.subr.mxu0 0.0
    %192 = vmatpush1.msra.mxu0 0.0
    %193 = vmatprep.subr.mxu0 0.0
    %194 = vmatpush1.msra.mxu0 0.0
    %195 = vmatprep.subr.mxu0 0.0
    %196 = vmatpush1.msra.mxu0 0.0
    %197 = vmatprep.subr.mxu0 0.0
    %198 = vmatpush1.msra.mxu0 0.0
    %199 = vmatprep.subr.mxu0 0.0
    %200 = vmatpush1.msra.mxu0 0.0
    %201 = vmatprep.subr.mxu0 0.0
    %202 = vmatpush1.msra.mxu0 0.0
    %203 = vmatprep.subr.mxu0 0.0
    %204 = vmatpush1.msra.mxu0 0.0
    %205 = vmatprep.subr.mxu0 0.0
    %206 = vmatpush1.msra.mxu0 0.0
    %207 = vmatprep.subr.mxu0 0.0
    %208 = vmatpush1.msra.mxu0 0.0
    %209 = vmatprep.subr.mxu0 0.0
    %210 = vmatpush1.msra.mxu0 0.0
    %211 = vmatprep.subr.mxu0 0.0
    %212 = vmatpush1.msra.mxu0 0.0
    %213 = vmatprep.subr.mxu0 0.0
    %214 = vmatpush1.msra.mxu0 0.0
    %215 = vmatprep.subr.mxu0 0.0
    %216 = vmatpush1.msra.mxu0 0.0
    %217 = vmatprep.subr.mxu0 0.0
    %218 = vmatpush1.msra.mxu0 0.0
    %219 = vmatprep.subr.mxu0 0.0
    %220 = vmatpush1.msra.mxu0 0.0
    %221 = vmatprep.subr.mxu0 0.0
    %222 = vmatpush1.msra.mxu0 0.0
    %223 = vmatprep.subr.mxu0 0.0
    %224 = vmatpush1.msra.mxu0 0.0
    %225 = vmatprep.subr.mxu0 0.0
    %226 = vmatpush1.msra.mxu0 0.0
    %227 = vmatprep.subr.mxu0 0.0
    %228 = vmatpush1.msra.mxu0 0.0
    %229 = vmatprep.subr.mxu0 0.0
    %230 = vmatpush1.msra.mxu0 0.0
    %231 = vmatprep.subr.mxu0 0.0
    %232 = vmatpush1.msra.mxu0 0.0
    %233 = vmatprep.subr.mxu0 0.0
    %234 = vmatpush1.msra.mxu0 0.0
    %235 = vmatprep.subr.mxu0 0.0
    %236 = vmatpush1.msra.mxu0 0.0
    %237 = vmatprep.subr.mxu0 0.0
    %238 = vmatpush1.msra.mxu0 0.0
    %239 = vmatprep.subr.mxu0 0.0
    %240 = vmatpush1.msra.mxu0 0.0
    %241 = vmatprep.mubr.f32.mxu0 0.0
    %242 = vmatmul.mubr.f32.gmra.mrb[0].mxu0 %v175
    %v243 = vpop.f32.mrb[0].mxu0
    %v244 = vadd.f32 %v171, %v243
    %v245 = vpop.f32.mrb[0].mxu0
    %246 = vdwg.mxu0
    %v247 = vld [vmem:[%s5] sm:$0xff]
    %v248 = vld [vmem:[%s5 + $0x8] sm:$0xff]
    %v249 = vld [vmem:[%s5 + $0x10] sm:$0xff]
    %v250 = vld [vmem:[%s5 + $0x18] sm:$0xff]
    %v251 = vld [vmem:[%s6] sm:$0x1]
    %v253 = vlaneseq
    %v254 = vshrl.u32 %v253, 7
    %v255 = vsub.s32 0, %v254
    %v256 = vrot.slane %v251, %v255
    %258 = vmatprep.subr.mxu0 0.0
    %259 = vmatpush1.msra.mxu0 %v247
    %260 = vmatprep.subr.mxu0 0.0
    %261 = vmatpush1.msra.mxu0 %v248
    %262 = vmatprep.subr.mxu0 0.0
    %263 = vmatpush1.msra.mxu0 %v249
    %264 = vmatprep.subr.mxu0 0.0
    %265 = vmatpush1.msra.mxu0 %v250
    %266 = vmatprep.subr.mxu0 0.0
    %267 = vmatpush1.msra.mxu0 0.0
    %268 = vmatprep.subr.mxu0 0.0
    %269 = vmatpush1.msra.mxu0 0.0
    %270 = vmatprep.subr.mxu0 0.0
    %271 = vmatpush1.msra.mxu0 0.0
    %272 = vmatprep.subr.mxu0 0.0
    %273 = vmatpush1.msra.mxu0 0.0
    %274 = vmatprep.subr.mxu0 0.0
    %275 = vmatpush1.msra.mxu0 0.0
    %276 = vmatprep.subr.mxu0 0.0
    %277 = vmatpush1.msra.mxu0 0.0
    %278 = vmatprep.subr.mxu0 0.0
    %279 = vmatpush1.msra.mxu0 0.0
    %280 = vmatprep.subr.mxu0 0.0
    %281 = vmatpush1.msra.mxu0 0.0
    %282 = vmatprep.subr.mxu0 0.0
    %283 = vmatpush1.msra.mxu0 0.0
    %284 = vmatprep.subr.mxu0 0.0
    %285 = vmatpush1.msra.mxu0 0.0
    %286 = vmatprep.subr.mxu0 0.0
    %287 = vmatpush1.msra.mxu0 0.0
    %288 = vmatprep.subr.mxu0 0.0
    %289 = vmatpush1.msra.mxu0 0.0
    %290 = vmatprep.subr.mxu0 0.0
    %291 = vmatpush1.msra.mxu0 0.0
    %292 = vmatprep.subr.mxu0 0.0
    %293 = vmatpush1.msra.mxu0 0.0
    %294 = vmatprep.subr.mxu0 0.0
    %295 = vmatpush1.msra.mxu0 0.0
    %296 = vmatprep.subr.mxu0 0.0
    %297 = vmatpush1.msra.mxu0 0.0
    %298 = vmatprep.subr.mxu0 0.0
    %299 = vmatpush1.msra.mxu0 0.0
    %300 = vmatprep.subr.mxu0 0.0
    %301 = vmatpush1.msra.mxu0 0.0
    %302 = vmatprep.subr.mxu0 0.0
    %303 = vmatpush1.msra.mxu0 0.0
    %304 = vmatprep.subr.mxu0 0.0
    %305 = vmatpush1.msra.mxu0 0.0
    %306 = vmatprep.subr.mxu0 0.0
    %307 = vmatpush1.msra.mxu0 0.0
    %308 = vmatprep.subr.mxu0 0.0
    %309 = vmatpush1.msra.mxu0 0.0
    %310 = vmatprep.subr.mxu0 0.0
    %311 = vmatpush1.msra.mxu0 0.0
    %312 = vmatprep.subr.mxu0 0.0
    %313 = vmatpush1.msra.mxu0 0.0
    %314 = vmatprep.subr.mxu0 0.0
    %315 = vmatpush1.msra.mxu0 0.0
    %316 = vmatprep.subr.mxu0 0.0
    %317 = vmatpush1.msra.mxu0 0.0
    %318 = vmatprep.subr.mxu0 0.0
    %319 = vmatpush1.msra.mxu0 0.0
    %320 = vmatprep.subr.mxu0 0.0
    %321 = vmatpush1.msra.mxu0 0.0
    %322 = vmatprep.mubr.f32.mxu0 0.0
    %323 = vmatmul.mubr.f32.gmra.mrb[0].mxu0 %v175
    %v324 = vpop.f32.mrb[0].mxu0
    %v325 = vadd.f32 %v256, %v324
    %v326 = vpop.f32.mrb[0].mxu0
    %327 = vdwg.mxu0
    %v328 = vld [vmem:[%s7] sm:$0x3]
    %v329 = vmul.f32 %v325, 0.5
    %v330 = vmul.f32 %v329, 1.442695
    %v331 = vpow.pop %v330
    %v332 = vmul.f32 %v328, %v331
    %v333 = vadd.f32 %v244, %v332
    %v334 = vld [vmem:[%s8] sm:$0xff]
    %v335 = vld [vmem:[%s8 + $0x8] sm:$0xff]
    %v336 = vld [vmem:[%s9] sm:$0x3]
    %v338 = vlaneseq
    %v339 = vshrl.u32 %v338, 7
    %v340 = vsub.s32 0, %v339
    %v341 = vrot.slane %v336, %v340
    %v342 = vlaneseq
    %v343 = vshrl.u32 %v342, 7
    %v344 = vsub.s32 1, %v343
    %v345 = vrot.slane %v336, %v344
    %vm348 = vcmask 64512
    %v350 = vsel %vm348, %v333, 0
    %352 = vmatprep.subr.mxu0 %v335
    %353 = vmatpush1.msra.mxu0 %v334
    %354 = vmatprep.subr.mxu0 0.0
    %355 = vmatpush1.msra.mxu0 0.0
    %356 = vmatprep.subr.mxu0 0.0
    %357 = vmatpush1.msra.mxu0 0.0
    %358 = vmatprep.subr.mxu0 0.0
    %359 = vmatpush1.msra.mxu0 0.0
    %360 = vmatprep.subr.mxu0 0.0
    %361 = vmatpush1.msra.mxu0 0.0
    %362 = vmatprep.subr.mxu0 0.0
    %363 = vmatpush1.msra.mxu0 0.0
    %364 = vmatprep.subr.mxu0 0.0
    %365 = vmatpush1.msra.mxu0 0.0
    %366 = vmatprep.subr.mxu0 0.0
    %367 = vmatpush1.msra.mxu0 0.0
    %368 = vmatprep.subr.mxu0 0.0
    %369 = vmatpush1.msra.mxu0 0.0
    %370 = vmatprep.subr.mxu0 0.0
    %371 = vmatpush1.msra.mxu0 0.0
    %372 = vmatprep.subr.mxu0 0.0
    %373 = vmatpush1.msra.mxu0 0.0
    %374 = vmatprep.subr.mxu0 0.0
    %375 = vmatpush1.msra.mxu0 0.0
    %376 = vmatprep.subr.mxu0 0.0
    %377 = vmatpush1.msra.mxu0 0.0
    %378 = vmatprep.subr.mxu0 0.0
    %379 = vmatpush1.msra.mxu0 0.0
    %380 = vmatprep.subr.mxu0 0.0
    %381 = vmatpush1.msra.mxu0 0.0
    %382 = vmatprep.subr.mxu0 0.0
    %383 = vmatpush1.msra.mxu0 0.0
    %384 = vmatprep.subr.mxu0 0.0
    %385 = vmatpush1.msra.mxu0 0.0
    %386 = vmatprep.subr.mxu0 0.0
    %387 = vmatpush1.msra.mxu0 0.0
    %388 = vmatprep.subr.mxu0 0.0
    %389 = vmatpush1.msra.mxu0 0.0
    %390 = vmatprep.subr.mxu0 0.0
    %391 = vmatpush1.msra.mxu0 0.0
    %392 = vmatprep.subr.mxu0 0.0
    %393 = vmatpush1.msra.mxu0 0.0
    %394 = vmatprep.subr.mxu0 0.0
    %395 = vmatpush1.msra.mxu0 0.0
    %396 = vmatprep.subr.mxu0 0.0
    %397 = vmatpush1.msra.mxu0 0.0
    %398 = vmatprep.subr.mxu0 0.0
    %399 = vmatpush1.msra.mxu0 0.0
    %400 = vmatprep.subr.mxu0 0.0
    %401 = vmatpush1.msra.mxu0 0.0
    %402 = vmatprep.subr.mxu0 0.0
    %403 = vmatpush1.msra.mxu0 0.0
    %404 = vmatprep.subr.mxu0 0.0
    %405 = vmatpush1.msra.mxu0 0.0
    %406 = vmatprep.subr.mxu0 0.0
    %407 = vmatpush1.msra.mxu0 0.0
    %408 = vmatprep.subr.mxu0 0.0
    %409 = vmatpush1.msra.mxu0 0.0
    %410 = vmatprep.subr.mxu0 0.0
    %411 = vmatpush1.msra.mxu0 0.0
    %412 = vmatprep.subr.mxu0 0.0
    %413 = vmatpush1.msra.mxu0 0.0
    %414 = vmatprep.subr.mxu0 0.0
    %415 = vmatpush1.msra.mxu0 0.0
    %416 = vmatprep.mubr.f32.mxu0 0.0
    %417 = vmatmul.mubr.f32.gmra.mrb[0].mxu0 %v350
    %v418 = vpop.f32.mrb[0].mxu0
    %v419 = vadd.f32 %v341, %v418
    %v420 = vpop.f32.mrb[0].mxu0
    %v421 = vadd.f32 %v345, %v420
    %422 = vdwg.mxu0
    %v423 = vmax.f32 %v419, 0.0
    %v424 = vmax.f32 %v421, 0.0
    %vm425 = vcmask 58368
    %426 = vst.msk [vmem:[#allocation2] sm:$0x3] %vm425, %v244
    %427 = vst.msk [vmem:[#allocation4] sm:$0x3] %vm425, %v325
    %v430 = vcombine.low %v423, %v424
    %v432 = vunpack.c.l.s4 1983009808
    %v433 = vunpack.c.0.s8 %v432
    %v434 = vlaneseq
    %v435 = vshrl.u32 %v434, 7
    %v436 = vsub.s32 %v433, %v435
    %v437 = vrot.slane %v430, %v436
    %439 = vst [vmem:[%s12] sm:$0xf] %v437
    // Predicated region
    $region42: #{vae_forward.8} parent=1 // pred_check
      _
    $region43: #{vae_forward.8} parent=1 // pred_check_branch
      %441 = sbr.rel (0) target = $region45
    $region44: #{vae_forward.8} parent=1 // pred_region
      %s443 = ssub.s32 32, 32
      %444 = vsyncadd [#allocation3], %s443
      %s446 = sshll.u32 [#allocation2], 4
      %s447 = int_to_ptr.vmem [resolvable:$true] %s446
      %449 = dma.vmem_to_hbm [thread:$0]  %s447, 32, %s10, [#allocation3]
    $region45: #{vae_forward.8} parent=1 // pred_fallthru
      _
    // Predicated region
    $region46: #{vae_forward.8} parent=1 // pred_check
      _
    $region47: #{vae_forward.8} parent=1 // pred_check_branch
      %451 = sbr.rel (0) target = $region49
    $region48: #{vae_forward.8} parent=1 // pred_region
      %s453 = ssub.s32 32, 32
      %454 = vsyncadd [#allocation5], %s453
      %s456 = sshll.u32 [#allocation4], 4
      %s457 = int_to_ptr.vmem [resolvable:$true] %s456
      %459 = dma.vmem_to_hbm [thread:$0]  %s457, 32, %s11, [#allocation5]
    $region49: #{vae_forward.8} parent=1 // pred_fallthru
      _
    // Predicated region
    $region50: #{vae_forward.8} parent=1 // pred_check
      _
    $region51: #{vae_forward.8} parent=1 // pred_check_branch
      %461 = sbr.rel (0) target = $region53
    $region52: #{vae_forward.8} parent=1 // pred_region
      _
    $region53: #{vae_forward.8} parent=1 // pred_fallthru
      _
    // Predicated region
    $region54: #{vae_forward.8} parent=1 // pred_check
      _
    $region55: #{vae_forward.8} parent=1 // pred_check_branch
      %463 = sbr.rel (0) target = $region57
    $region56: #{vae_forward.8} parent=1 // pred_region
      %464 = dma.done [#allocation3], 32
    $region57: #{vae_forward.8} parent=1 // pred_fallthru
      _
    // Predicated region
    $region58: #{vae_forward.8} parent=1 // pred_check
      _
    $region59: #{vae_forward.8} parent=1 // pred_check_branch
      %466 = sbr.rel (0) target = $region61
    $region60: #{vae_forward.8} parent=1 // pred_region
      %467 = dma.done [#allocation5], 32
    $region61: #{vae_forward.8} parent=1 // pred_fallthru
      _
    // Predicated region
    $region62: #{vae_forward.8} parent=1 // pred_check
      _
    $region63: #{vae_forward.8} parent=1 // pred_check_branch
      %469 = sbr.rel (0) target = $region65
    $region64: #{vae_forward.8} parent=1 // pred_region
      _
    $region65: #{vae_forward.8} parent=1 // pred_fallthru
      _
    %470 = vsyncpa [#allocation3], 1
    %471 = vsyncpa [#allocation5], 1

// kernel: vae_forward.9
$region0: #{vae_forward.9}
  #allocation0 [shape = 'u32[]', space=smem, size = 0x4, offset = 0x4, fixed_abs, tag = 'smem constant byte address 0x4 - core index']
  #allocation1 [shape = 'u32[144,128]{1,0:T(1,128)}', space=vmem, size = 0x12000, scoped, tag = 'internal scratch']
  %s0 = inlined_call_operand.vmem [shape: f32[32,64], index: 0, kind: input, shape index: {}]
  %s1 = inlined_call_operand.vmem [shape: f32[64,64], index: 1, kind: input, shape index: {}]
  %s2 = inlined_call_operand.vmem [shape: f32[1,64], index: 2, kind: input, shape index: {}]
  %s3 = inlined_call_operand.vmem [shape: f32[32,64], index: 3, kind: output, shape index: {}]
  %s4 = sld [smem:[#allocation0]]
  $region22: #{vae_forward.9} parent=0
    _
  %s6 = ssub.s32 1, %s4
  %s7 = scalar_select 0, %s6, %s4
  // Predicated region
  $region2: #{vae_forward.9} parent=0 // pred_check
    _
  $region3: #{vae_forward.9} parent=0 // pred_check_branch
    %9 = sbr.rel (0) target = $region5
  $region4: #{vae_forward.9} parent=0 // pred_region
    _
  $region5: #{vae_forward.9} parent=0 // pred_fallthru
    _
  // Predicated region
  $region6: #{vae_forward.9} parent=0 // pred_check
    _
  $region7: #{vae_forward.9} parent=0 // pred_check_branch
    %11 = sbr.rel (0) target = $region9
  $region8: #{vae_forward.9} parent=0 // pred_region
    _
  $region9: #{vae_forward.9} parent=0 // pred_fallthru
    _
  // Predicated region
  $region10: #{vae_forward.9} parent=0 // pred_check
    _
  $region11: #{vae_forward.9} parent=0 // pred_check_branch
    %13 = sbr.rel (0) target = $region13
  $region12: #{vae_forward.9} parent=0 // pred_region
    _
  $region13: #{vae_forward.9} parent=0 // pred_fallthru
    _
  %v15 = vld [vmem:[%s0] sm:$0xff]
  %v16 = vld [vmem:[%s0 + $0x8] sm:$0xff]
  %v17 = vld [vmem:[%s0 + $0x10] sm:$0xff]
  %v18 = vld [vmem:[%s0 + $0x18] sm:$0xff]
  %v19 = vld [vmem:[%s1] sm:$0xff]
  %v20 = vld [vmem:[%s1 + $0x8] sm:$0xff]
  %v21 = vld [vmem:[%s1 + $0x10] sm:$0xff]
  %v22 = vld [vmem:[%s1 + $0x18] sm:$0xff]
  %v23 = vld [vmem:[%s1 + $0x20] sm:$0xff]
  %v24 = vld [vmem:[%s1 + $0x28] sm:$0xff]
  %v25 = vld [vmem:[%s1 + $0x30] sm:$0xff]
  %v26 = vld [vmem:[%s1 + $0x38] sm:$0xff]
  %v27 = vpack.c.bf16 %v16, %v15
  %v28 = vpack.c.bf16 %v18, %v17
  %v29 = vpack.c.bf16 %v20, %v19
  %v30 = vpack.c.bf16 %v22, %v21
  %v31 = vpack.c.bf16 %v24, %v23
  %v32 = vpack.c.bf16 %v26, %v25
  %v33 = vld [vmem:[%s2] sm:$0x1]
  %v35 = vlaneseq
  %v36 = vshrl.u32 %v35, 7
  %v37 = vsub.s32 0, %v36
  %v38 = vrot.slane %v33, %v37
  %vm40 = vcmask 523264
  %v42 = vsel %vm40, %v27, 0
  %v45 = vsel %vm40, %v28, 0
  %47 = vmatprep.subr.bf16.mxu0 0
  %48 = vmatpush1.bf16.msra.mxu0 %v29
  %49 = vmatprep.subr.bf16.mxu0 0
  %50 = vmatpush1.bf16.msra.mxu0 %v30
  %51 = vmatprep.subr.bf16.mxu0 0
  %52 = vmatpush1.bf16.msra.mxu0 %v31
  %53 = vmatprep.subr.bf16.mxu0 0
  %54 = vmatpush1.bf16.msra.mxu0 %v32
  %55 = vmatprep.subr.bf16.mxu0 0
  %56 = vmatpush1.bf16.msra.mxu0 0
  %57 = vmatprep.subr.bf16.mxu0 0
  %58 = vmatpush1.bf16.msra.mxu0 0
  %59 = vmatprep.subr.bf16.mxu0 0
  %60 = vmatpush1.bf16.msra.mxu0 0
  %61 = vmatprep.subr.bf16.mxu0 0
  %62 = vmatpush1.bf16.msra.mxu0 0
  %63 = vmatprep.subr.bf16.mxu0 0
  %64 = vmatpush1.bf16.msra.mxu0 0
  %65 = vmatprep.subr.bf16.mxu0 0
  %66 = vmatpush1.bf16.msra.mxu0 0
  %67 = vmatprep.subr.bf16.mxu0 0
  %68 = vmatpush1.bf16.msra.mxu0 0
  %69 = vmatprep.subr.bf16.mxu0 0
  %70 = vmatpush1.bf16.msra.mxu0 0
  %71 = vmatprep.subr.bf16.mxu0 0
  %72 = vmatpush1.bf16.msra.mxu0 0
  %73 = vmatprep.subr.bf16.mxu0 0
  %74 = vmatpush1.bf16.msra.mxu0 0
  %75 = vmatprep.subr.bf16.mxu0 0
  %76 = vmatpush1.bf16.msra.mxu0 0
  %77 = vmatprep.subr.bf16.mxu0 0
  %78 = vmatpush1.bf16.msra.mxu0 0
  %79 = vmatprep.mubr.bf16.mxu0 0
  %80 = vmatmul.mubr.bf16.gmra.mrb[0].mxu0 %v42
  %v81 = vpop.f32.mrb[0].mxu0
  %v82 = vadd.f32 %v38, %v81
  %v83 = vpop.f32.mrb[0].mxu0
  %v84 = vpop.f32.mrb[0].mxu0
  %v85 = vadd.f32 %v38, %v84
  %v86 = vpop.f32.mrb[0].mxu0
  %87 = vmatprep.mubr.bf16.mxu0 0
  %88 = vmatmul.mubr.bf16.gmra.mrb[0].mxu0 %v45
  %v89 = vpop.f32.mrb[0].mxu0
  %v90 = vadd.f32 %v38, %v89
  %v91 = vpop.f32.mrb[0].mxu0
  %v92 = vpop.f32.mrb[0].mxu0
  %v93 = vadd.f32 %v38, %v92
  %v94 = vpop.f32.mrb[0].mxu0
  %95 = vdwg.mxu0
  %v96 = vmax.f32 %v82, 0.0
  %v97 = vmax.f32 %v85, 0.0
  %v98 = vmax.f32 %v90, 0.0
  %v99 = vmax.f32 %v93, 0.0
  %100 = vst.msk [vmem:[%s3] sm:$0xff] %vm40, %v96
  %101 = vst.msk [vmem:[%s3 + $0x8] sm:$0xff] %vm40, %v97
  %102 = vst.msk [vmem:[%s3 + $0x10] sm:$0xff] %vm40, %v98
  %103 = vst.msk [vmem:[%s3 + $0x18] sm:$0xff] %vm40, %v99
  // Predicated region
  $region14: #{vae_forward.9} parent=0 // pred_check
    _
  $region15: #{vae_forward.9} parent=0 // pred_check_branch
    %105 = sbr.rel (0) target = $region17
  $region16: #{vae_forward.9} parent=0 // pred_region
    _
  $region17: #{vae_forward.9} parent=0 // pred_fallthru
    _
  // Predicated region
  $region18: #{vae_forward.9} parent=0 // pred_check
    _
  $region19: #{vae_forward.9} parent=0 // pred_check_branch
    %107 = sbr.rel (0) target = $region21
  $region20: #{vae_forward.9} parent=0 // pred_region
    _
  $region21: #{vae_forward.9} parent=0 // pred_fallthru
    _

// kernel: vae_forward.10
$region0: #{vae_forward.10}
  #allocation0 [shape = 'u32[]', space=smem, size = 0x4, offset = 0x4, fixed_abs, tag = 'smem constant byte address 0x4 - core index']
  #allocation1 [shape = 'u32[144,128]{1,0:T(1,128)}', space=vmem, size = 0x12000, scoped, tag = 'internal scratch']
  %s0 = inlined_call_operand.vmem [shape: f32[128,64], index: 0, kind: input, shape index: {}]
  %s1 = inlined_call_operand.vmem [shape: f32[64,32], index: 1, kind: input, shape index: {}]
  %s2 = inlined_call_operand.vmem [shape: f32[1,32], index: 2, kind: input, shape index: {}]
  %s3 = inlined_call_operand.vmem [shape: f32[128,32], index: 3, kind: output, shape index: {}]
  %s4 = sld [smem:[#allocation0]]
  $region22: #{vae_forward.10} parent=0
    _
  %s6 = ssub.s32 1, %s4
  %s7 = scalar_select 0, %s6, %s4
  // Predicated region
  $region2: #{vae_forward.10} parent=0 // pred_check
    _
  $region3: #{vae_forward.10} parent=0 // pred_check_branch
    %9 = sbr.rel (0) target = $region5
  $region4: #{vae_forward.10} parent=0 // pred_region
    _
  $region5: #{vae_forward.10} parent=0 // pred_fallthru
    _
  // Predicated region
  $region6: #{vae_forward.10} parent=0 // pred_check
    _
  $region7: #{vae_forward.10} parent=0 // pred_check_branch
    %11 = sbr.rel (0) target = $region9
  $region8: #{vae_forward.10} parent=0 // pred_region
    _
  $region9: #{vae_forward.10} parent=0 // pred_fallthru
    _
  // Predicated region
  $region10: #{vae_forward.10} parent=0 // pred_check
    _
  $region11: #{vae_forward.10} parent=0 // pred_check_branch
    %13 = sbr.rel (0) target = $region13
  $region12: #{vae_forward.10} parent=0 // pred_region
    _
  $region13: #{vae_forward.10} parent=0 // pred_fallthru
    _
  %v15 = vld [vmem:[%s0] sm:$0xff]
  %v16 = vld [vmem:[%s0 + $0x8] sm:$0xff]
  %v17 = vld [vmem:[%s0 + $0x10] sm:$0xff]
  %v18 = vld [vmem:[%s0 + $0x18] sm:$0xff]
  %v19 = vld [vmem:[%s0 + $0x20] sm:$0xff]
  %v20 = vld [vmem:[%s0 + $0x28] sm:$0xff]
  %v21 = vld [vmem:[%s0 + $0x30] sm:$0xff]
  %v22 = vld [vmem:[%s0 + $0x38] sm:$0xff]
  %v23 = vld [vmem:[%s0 + $0x40] sm:$0xff]
  %v24 = vld [vmem:[%s0 + $0x48] sm:$0xff]
  %v25 = vld [vmem:[%s0 + $0x50] sm:$0xff]
  %v26 = vld [vmem:[%s0 + $0x58] sm:$0xff]
  %v27 = vld [vmem:[%s0 + $0x60] sm:$0xff]
  %v28 = vld [vmem:[%s0 + $0x68] sm:$0xff]
  %v29 = vld [vmem:[%s0 + $0x70] sm:$0xff]
  %v30 = vld [vmem:[%s0 + $0x78] sm:$0xff]
  %v31 = vld [vmem:[%s1] sm:$0xff]
  %v32 = vld [vmem:[%s1 + $0x8] sm:$0xff]
  %v33 = vld [vmem:[%s1 + $0x10] sm:$0xff]
  %v34 = vld [vmem:[%s1 + $0x18] sm:$0xff]
  %v35 = vld [vmem:[%s1 + $0x20] sm:$0xff]
  %v36 = vld [vmem:[%s1 + $0x28] sm:$0xff]
  %v37 = vld [vmem:[%s1 + $0x30] sm:$0xff]
  %v38 = vld [vmem:[%s1 + $0x38] sm:$0xff]
  %v39 = vpack.c.bf16 %v16, %v15
  %v40 = vpack.c.bf16 %v18, %v17
  %v41 = vpack.c.bf16 %v20, %v19
  %v42 = vpack.c.bf16 %v22, %v21
  %v43 = vpack.c.bf16 %v24, %v23
  %v44 = vpack.c.bf16 %v26, %v25
  %v45 = vpack.c.bf16 %v28, %v27
  %v46 = vpack.c.bf16 %v30, %v29
  %v47 = vpack.c.bf16 %v32, %v31
  %v48 = vpack.c.bf16 %v34, %v33
  %v49 = vpack.c.bf16 %v36, %v35
  %v50 = vpack.c.bf16 %v38, %v37
  %v51 = vld [vmem:[%s2] sm:$0x1]
  %v53 = vlaneseq
  %v54 = vshrl.u32 %v53, 7
  %v55 = vsub.s32 0, %v54
  %v56 = vrot.slane %v51, %v55
  %vm58 = vcmask 523264
  %v60 = vsel %vm58, %v39, 0
  %v63 = vsel %vm58, %v40, 0
  %v66 = vsel %vm58, %v41, 0
  %v69 = vsel %vm58, %v42, 0
  %v72 = vsel %vm58, %v43, 0
  %v75 = vsel %vm58, %v44, 0
  %v78 = vsel %vm58, %v45, 0
  %v81 = vsel %vm58, %v46, 0
  %83 = vmatprep.subr.bf16.mxu0 0
  %84 = vmatpush1.bf16.msra.mxu0 %v47
  %85 = vmatprep.subr.bf16.mxu0 0
  %86 = vmatpush1.bf16.msra.mxu0 %v48
  %87 = vmatprep.subr.bf16.mxu0 0
  %88 = vmatpush1.bf16.msra.mxu0 %v49
  %89 = vmatprep.subr.bf16.mxu0 0
  %90 = vmatpush1.bf16.msra.mxu0 %v50
  %91 = vmatprep.subr.bf16.mxu0 0
  %92 = vmatpush1.bf16.msra.mxu0 0
  %93 = vmatprep.subr.bf16.mxu0 0
  %94 = vmatpush1.bf16.msra.mxu0 0
  %95 = vmatprep.subr.bf16.mxu0 0
  %96 = vmatpush1.bf16.msra.mxu0 0
  %97 = vmatprep.subr.bf16.mxu0 0
  %98 = vmatpush1.bf16.msra.mxu0 0
  %99 = vmatprep.subr.bf16.mxu0 0
  %100 = vmatpush1.bf16.msra.mxu0 0
  %101 = vmatprep.subr.bf16.mxu0 0
  %102 = vmatpush1.bf16.msra.mxu0 0
  %103 = vmatprep.subr.bf16.mxu0 0
  %104 = vmatpush1.bf16.msra.mxu0 0
  %105 = vmatprep.subr.bf16.mxu0 0
  %106 = vmatpush1.bf16.msra.mxu0 0
  %107 = vmatprep.subr.bf16.mxu0 0
  %108 = vmatpush1.bf16.msra.mxu0 0
  %109 = vmatprep.subr.bf16.mxu0 0
  %110 = vmatpush1.bf16.msra.mxu0 0
  %111 = vmatprep.subr.bf16.mxu0 0
  %112 = vmatpush1.bf16.msra.mxu0 0
  %113 = vmatprep.subr.bf16.mxu0 0
  %114 = vmatpush1.bf16.msra.mxu0 0
  %115 = vmatprep.mubr.bf16.mxu0 0
  %116 = vmatmul.mubr.bf16.gmra.mrb[0].mxu0 %v60
  %v117 = vpop.f32.mrb[0].mxu0
  %v118 = vadd.f32 %v56, %v117
  %v119 = vpop.f32.mrb[0].mxu0
  %v120 = vpop.f32.mrb[0].mxu0
  %v121 = vadd.f32 %v56, %v120
  %v122 = vpop.f32.mrb[0].mxu0
  %123 = vmatprep.mubr.bf16.mxu0 0
  %124 = vmatmul.mubr.bf16.gmra.mrb[0].mxu0 %v63
  %v125 = vpop.f32.mrb[0].mxu0
  %v126 = vadd.f32 %v56, %v125
  %v127 = vpop.f32.mrb[0].mxu0
  %v128 = vpop.f32.mrb[0].mxu0
  %v129 = vadd.f32 %v56, %v128
  %v130 = vpop.f32.mrb[0].mxu0
  %131 = vmatprep.mubr.bf16.mxu0 0
  %132 = vmatmul.mubr.bf16.gmra.mrb[0].mxu0 %v66
  %v133 = vpop.f32.mrb[0].mxu0
  %v134 = vadd.f32 %v56, %v133
  %v135 = vpop.f32.mrb[0].mxu0
  %v136 = vpop.f32.mrb[0].mxu0
  %v137 = vadd.f32 %v56, %v136
  %v138 = vpop.f32.mrb[0].mxu0
  %139 = vmatprep.mubr.bf16.mxu0 0
  %140 = vmatmul.mubr.bf16.gmra.mrb[0].mxu0 %v69
  %v141 = vpop.f32.mrb[0].mxu0
  %v142 = vadd.f32 %v56, %v141
  %v143 = vpop.f32.mrb[0].mxu0
  %v144 = vpop.f32.mrb[0].mxu0
  %v145 = vadd.f32 %v56, %v144
  %v146 = vpop.f32.mrb[0].mxu0
  %147 = vmatprep.mubr.bf16.mxu0 0
  %148 = vmatmul.mubr.bf16.gmra.mrb[0].mxu0 %v72
  %v149 = vpop.f32.mrb[0].mxu0
  %v150 = vadd.f32 %v56, %v149
  %v151 = vpop.f32.mrb[0].mxu0
  %v152 = vpop.f32.mrb[0].mxu0
  %v153 = vadd.f32 %v56, %v152
  %v154 = vpop.f32.mrb[0].mxu0
  %155 = vmatprep.mubr.bf16.mxu0 0
  %156 = vmatmul.mubr.bf16.gmra.mrb[0].mxu0 %v75
  %v157 = vpop.f32.mrb[0].mxu0
  %v158 = vadd.f32 %v56, %v157
  %v159 = vpop.f32.mrb[0].mxu0
  %v160 = vpop.f32.mrb[0].mxu0
  %v161 = vadd.f32 %v56, %v160
  %v162 = vpop.f32.mrb[0].mxu0
  %163 = vmatprep.mubr.bf16.mxu0 0
  %164 = vmatmul.mubr.bf16.gmra.mrb[0].mxu0 %v78
  %v165 = vpop.f32.mrb[0].mxu0
  %v166 = vadd.f32 %v56, %v165
  %v167 = vpop.f32.mrb[0].mxu0
  %v168 = vpop.f32.mrb[0].mxu0
  %v169 = vadd.f32 %v56, %v168
  %v170 = vpop.f32.mrb[0].mxu0
  %171 = vmatprep.mubr.bf16.mxu0 0
  %172 = vmatmul.mubr.bf16.gmra.mrb[0].mxu0 %v81
  %v173 = vpop.f32.mrb[0].mxu0
  %v174 = vadd.f32 %v56, %v173
  %v175 = vpop.f32.mrb[0].mxu0
  %v176 = vpop.f32.mrb[0].mxu0
  %v177 = vadd.f32 %v56, %v176
  %v178 = vpop.f32.mrb[0].mxu0
  %179 = vdwg.mxu0
  %v180 = vmax.f32 %v118, 0.0
  %v181 = vmax.f32 %v121, 0.0
  %v182 = vmax.f32 %v126, 0.0
  %v183 = vmax.f32 %v129, 0.0
  %v184 = vmax.f32 %v134, 0.0
  %v185 = vmax.f32 %v137, 0.0
  %v186 = vmax.f32 %v142, 0.0
  %v187 = vmax.f32 %v145, 0.0
  %v188 = vmax.f32 %v150, 0.0
  %v189 = vmax.f32 %v153, 0.0
  %v190 = vmax.f32 %v158, 0.0
  %v191 = vmax.f32 %v161, 0.0
  %v192 = vmax.f32 %v166, 0.0
  %v193 = vmax.f32 %v169, 0.0
  %v194 = vmax.f32 %v174, 0.0
  %v195 = vmax.f32 %v177, 0.0
  %vm196 = vcmask 261120
  %197 = vst.msk [vmem:[%s3] sm:$0xff] %vm196, %v180
  %198 = vst.msk [vmem:[%s3 + $0x8] sm:$0xff] %vm196, %v181
  %199 = vst.msk [vmem:[%s3 + $0x10] sm:$0xff] %vm196, %v182
  %200 = vst.msk [vmem:[%s3 + $0x18] sm:$0xff] %vm196, %v183
  %201 = vst.msk [vmem:[%s3 + $0x20] sm:$0xff] %vm196, %v184
  %202 = vst.msk [vmem:[%s3 + $0x28] sm:$0xff] %vm196, %v185
  %203 = vst.msk [vmem:[%s3 + $0x30] sm:$0xff] %vm196, %v186
  %204 = vst.msk [vmem:[%s3 + $0x38] sm:$0xff] %vm196, %v187
  %205 = vst.msk [vmem:[%s3 + $0x40] sm:$0xff] %vm196, %v188
  %206 = vst.msk [vmem:[%s3 + $0x48] sm:$0xff] %vm196, %v189
  %207 = vst.msk [vmem:[%s3 + $0x50] sm:$0xff] %vm196, %v190
  %208 = vst.msk [vmem:[%s3 + $0x58] sm:$0xff] %vm196, %v191
  %209 = vst.msk [vmem:[%s3 + $0x60] sm:$0xff] %vm196, %v192
  %210 = vst.msk [vmem:[%s3 + $0x68] sm:$0xff] %vm196, %v193
  %211 = vst.msk [vmem:[%s3 + $0x70] sm:$0xff] %vm196, %v194
  %212 = vst.msk [vmem:[%s3 + $0x78] sm:$0xff] %vm196, %v195
  // Predicated region
  $region14: #{vae_forward.10} parent=0 // pred_check
    _
  $region15: #{vae_forward.10} parent=0 // pred_check_branch
    %214 = sbr.rel (0) target = $region17
  $region16: #{vae_forward.10} parent=0 // pred_region
    _
  $region17: #{vae_forward.10} parent=0 // pred_fallthru
    _
  // Predicated region
  $region18: #{vae_forward.10} parent=0 // pred_check
    _
  $region19: #{vae_forward.10} parent=0 // pred_check_branch
    %216 = sbr.rel (0) target = $region21
  $region20: #{vae_forward.10} parent=0 // pred_region
    _
  $region21: #{vae_forward.10} parent=0 // pred_fallthru
    _

// kernel: vae_forward.11
$region0: #{vae_forward.11}
  #allocation0 [shape = 'u32[]', space=smem, size = 0x4, offset = 0x4, fixed_abs, tag = 'smem constant byte address 0x4 - core index']
  #allocation1 [shape = 'u32[144,128]{1,0:T(1,128)}', space=vmem, size = 0x12000, scoped, tag = 'internal scratch']
  %s0 = inlined_call_operand.vmem [shape: f32[512,72], index: 0, kind: input, shape index: {}]
  %s1 = inlined_call_operand.vmem [shape: f32[72,4], index: 1, kind: input, shape index: {}]
  %s2 = inlined_call_operand.vmem [shape: f32[1,4], index: 2, kind: input, shape index: {}]
  %s3 = inlined_call_operand.vmem [shape: f32[512,4], index: 3, kind: output, shape index: {}]
  %s4 = sld [smem:[#allocation0]]
  $region45: #{vae_forward.11} parent=0
    _
  %s6 = ssub.s32 1, %s4
  %s7 = scalar_select 0, %s6, %s4
  loop: start=0, step=1, limit=4
  $region2: #{vae_forward.11} parent=0 // loop_pre_header
    _
  $region3: #{vae_forward.11} parent=0 // loop_header
    %s9 = sphi 0, %s13
    %p10 = scmp.ge.s32.totalorder %s9, 4
    %s19 = sphi 0, %s21
    %s22 = sphi 0, %s19
    %s23 = sphi 0, %s22
    %s39 = sphi 0, %s23
    %s43 = sphi 0, %s43
    %s45 = sphi 0, %s43
    %s46 = sphi 0, %s45
    %s60 = sphi 0, %s46
    %s64 = sphi 0, %s64
    %s66 = sphi 0, %s64
    %s67 = sphi 0, %s66
    %s81 = sphi 0, %s67
    %s87 = sphi 0, %s89
    %s90 = sphi 0, %s87
    %s91 = sphi 0, %s90
    %s107 = sphi 0, %s91
  $region4: #{vae_forward.11} parent=0 // loop_header_branch
    %12 = sbr.rel (%p10) target = $region8
  $region5: #{vae_forward.11} parent=0 // loop_body
    %s14 = ssub.s32 %s9, 1
    %s15 = ssub.s32 %s9, 2
    %s16 = sadd.s32 %s9, 1
    %s17 = ssub.s32 %s9, %s16
    %p18 = scmp.eq.s32.totalorder %s17, 0
    %s20 = sadd.s32 %s19, 1
    %s21 = scalar_select %p18, %s19, %s20
    %p24 = pneg %p18
    %p25 = scmp.eq.s32.totalorder %s9, 1
    %p26 = por %p24, %p25
    %p27 = scmp.ne.s32.totalorder %s19, %s22
    %p28 = scmp.eq.s32.totalorder %s9, 0
    %p29 = por %p27, %p28
    %p30 = scmp.ne.s32.totalorder %s19, %s22
    %p31 = scmp.eq.s32.totalorder %s14, 1
    %p32 = por %p30, %p31
    %p33 = scmp.ne.s32.totalorder %s22, %s23
    %p34 = scmp.eq.s32.totalorder %s14, 0
    %p35 = por %p33, %p34
    %p36 = scmp.ne.s32.totalorder %s22, %s23
    %p37 = scmp.eq.s32.totalorder %s15, 1
    %p38 = por %p36, %p37
    %p40 = scmp.ne.s32.totalorder %s23, %s39
    %p41 = scmp.eq.s32.totalorder %s15, 0
    %p42 = por %p40, %p41
    %s44 = sadd.s32 %s43, 1
    %p47 = scmp.eq.s32.totalorder %s9, 1
    %p48 = scmp.ne.s32.totalorder %s43, %s45
    %p49 = scmp.eq.s32.totalorder %s9, 0
    %p50 = por %p48, %p49
    %p51 = scmp.ne.s32.totalorder %s43, %s45
    %p52 = scmp.eq.s32.totalorder %s14, 1
    %p53 = por %p51, %p52
    %p54 = scmp.ne.s32.totalorder %s45, %s46
    %p55 = scmp.eq.s32.totalorder %s14, 0
    %p56 = por %p54, %p55
    %p57 = scmp.ne.s32.totalorder %s45, %s46
    %p58 = scmp.eq.s32.totalorder %s15, 1
    %p59 = por %p57, %p58
    %p61 = scmp.ne.s32.totalorder %s46, %s60
    %p62 = scmp.eq.s32.totalorder %s15, 0
    %p63 = por %p61, %p62
    %s65 = sadd.s32 %s64, 1
    %p68 = scmp.eq.s32.totalorder %s9, 1
    %p69 = scmp.ne.s32.totalorder %s64, %s66
    %p70 = scmp.eq.s32.totalorder %s9, 0
    %p71 = por %p69, %p70
    %p72 = scmp.ne.s32.totalorder %s64, %s66
    %p73 = scmp.eq.s32.totalorder %s14, 1
    %p74 = por %p72, %p73
    %p75 = scmp.ne.s32.totalorder %s66, %s67
    %p76 = scmp.eq.s32.totalorder %s14, 0
    %p77 = por %p75, %p76
    %p78 = scmp.ne.s32.totalorder %s66, %s67
    %p79 = scmp.eq.s32.totalorder %s15, 1
    %p80 = por %p78, %p79
    %p82 = scmp.ne.s32.totalorder %s67, %s81
    %p83 = scmp.eq.s32.totalorder %s15, 0
    %p84 = por %p82, %p83
    %s85 = ssub.s32 %s9, %s16
    %p86 = scmp.eq.s32.totalorder %s85, 0
    %s88 = sadd.s32 %s87, 1
    %s89 = scalar_select %p86, %s87, %s88
    %p92 = pneg %p86
    %p93 = scmp.eq.s32.totalorder %s9, 1
    %p94 = por %p92, %p93
    %p95 = scmp.ne.s32.totalorder %s87, %s90
    %p96 = scmp.eq.s32.totalorder %s9, 0
    %p97 = por %p95, %p96
    %p98 = scmp.ne.s32.totalorder %s87, %s90
    %p99 = scmp.eq.s32.totalorder %s14, 1
    %p100 = por %p98, %p99
    %p101 = scmp.ne.s32.totalorder %s90, %s91
    %p102 = scmp.eq.s32.totalorder %s14, 0
    %p103 = por %p101, %p102
    %p104 = scmp.ne.s32.totalorder %s90, %s91
    %p105 = scmp.eq.s32.totalorder %s15, 1
    %p106 = por %p104, %p105
    %p108 = scmp.ne.s32.totalorder %s91, %s107
    %p109 = scmp.eq.s32.totalorder %s15, 0
    %p110 = por %p108, %p109
    %p111 = scmp.le.s32.totalorder 1, %s9
    %p112 = scmp.lt.s32.totalorder %s9, 3
    %p113 = pnand %p111, %p112
    %p114 = pneg %p113
    // Predicated region
    $region9: #{vae_forward.11} parent=5 // pred_check
      _
    $region10: #{vae_forward.11} parent=5 // pred_check_branch
      %116 = sbr.rel (%p113) target = $region12
    $region11: #{vae_forward.11} parent=5 // pred_region
      %s117 = ssub.s32 %s9, 1
      // Predicated region
      $region13: #{vae_forward.11} parent=11 // pred_check
        %p118 = pneg %p56
      $region14: #{vae_forward.11} parent=11 // pred_check_branch
        %120 = sbr.rel (%p118) target = $region16
      $region15: #{vae_forward.11} parent=11 // pred_region
        _
      $region16: #{vae_forward.11} parent=11 // pred_fallthru
        _
      // Predicated region
      $region17: #{vae_forward.11} parent=11 // pred_check
        %p121 = pneg %p77
      $region18: #{vae_forward.11} parent=11 // pred_check_branch
        %123 = sbr.rel (%p121) target = $region20
      $region19: #{vae_forward.11} parent=11 // pred_region
        _
      $region20: #{vae_forward.11} parent=11 // pred_fallthru
        _
    $region12: #{vae_forward.11} parent=5 // pred_fallthru
      _
    %p124 = scmp.lt.s32.totalorder %s9, 2
    // Predicated region
    $region21: #{vae_forward.11} parent=5 // pred_check
      %p125 = pneg %p124
    $region22: #{vae_forward.11} parent=5 // pred_check_branch
      %127 = sbr.rel (%p125) target = $region24
    $region23: #{vae_forward.11} parent=5 // pred_region
      // Predicated region
      $region25: #{vae_forward.11} parent=23 // pred_check
        %p128 = pneg %p29
      $region26: #{vae_forward.11} parent=23 // pred_check_branch
        %130 = sbr.rel (%p128) target = $region28
      $region27: #{vae_forward.11} parent=23 // pred_region
        %s131 = smul.u32 32, %s9
        %p132 = scmp.lt.s32.totalorder %s131, 63
        %s133 = scalar_select %p132, %s131, 63
        %s134 = smul.addr %s133, 8
        %s135 = scalar_lea.vmem %s0, %s134
        %s136 = smul.u32 32, %s9
      $region28: #{vae_forward.11} parent=23 // pred_fallthru
        _
    $region24: #{vae_forward.11} parent=5 // pred_fallthru
      _
    %p137 = scmp.le.s32.totalorder 1, %s9
    %p138 = scmp.lt.s32.totalorder %s9, 3
    %p139 = pnand %p137, %p138
    %p140 = pneg %p139
    // Predicated region
    $region29: #{vae_forward.11} parent=5 // pred_check
      _
    $region30: #{vae_forward.11} parent=5 // pred_check_branch
      %142 = sbr.rel (%p139) target = $region32
    $region31: #{vae_forward.11} parent=5 // pred_region
      %s143 = ssub.s32 %s9, 1
      %s144 = smul.u32 32, %s14
      %p145 = scmp.lt.s32.totalorder %s144, 63
      %s146 = scalar_select %p145, %s144, 63
      %s147 = smul.addr %s146, 8
      %s148 = scalar_lea.vmem %s0, %s147
      %p149 = pneg %p35
      %p150 = pneg %p32
      %p151 = pneg %p56
      %p152 = pneg %p53
      %p153 = pneg %p77
      %p154 = pneg %p74
      %p155 = pneg %p103
      %p156 = pneg %p100
      %s157 = smul.u32 32, %s14
      %p158 = scmp.lt.s32.totalorder %s157, 63
      %s159 = scalar_select %p158, %s157, 63
      %s160 = smul.addr %s159, 8
      %s161 = scalar_lea.vmem %s3, %s160
      %s162 = smul.u32 32, %s14
      %p163 = scmp.lt.s32.totalorder %s162, 63
      %s164 = scalar_select %p163, %s162, 63
      %s165 = smul.addr %s164, 8
      %s166 = scalar_lea.vmem %s0, %s165
      %s167 = smul.u32 32, %s14
      %s168 = smul.u32 32, %s14
      %p169 = scmp.lt.s32.totalorder %s168, 63
      %s170 = scalar_select %p169, %s168, 63
      %s171 = smul.addr %s170, 8
      %s172 = scalar_lea.vmem %s3, %s171
      %s173 = smul.u32 32, %s14
      %v175 = vld [vmem:[%s166] sm:$0xff]
      %v176 = vld [vmem:[%s166 + $0x8] sm:$0xff]
      %v177 = vld [vmem:[%s166 + $0x10] sm:$0xff]
      %v178 = vld [vmem:[%s166 + $0x18] sm:$0xff]
      %v179 = vld [vmem:[%s166 + $0x20] sm:$0xff]
      %v180 = vld [vmem:[%s166 + $0x28] sm:$0xff]
      %v181 = vld [vmem:[%s166 + $0x30] sm:$0xff]
      %v182 = vld [vmem:[%s166 + $0x38] sm:$0xff]
      %v183 = vld [vmem:[%s166 + $0x40] sm:$0xff]
      %v184 = vld [vmem:[%s166 + $0x48] sm:$0xff]
      %v185 = vld [vmem:[%s166 + $0x50] sm:$0xff]
      %v186 = vld [vmem:[%s166 + $0x58] sm:$0xff]
      %v187 = vld [vmem:[%s166 + $0x60] sm:$0xff]
      %v188 = vld [vmem:[%s166 + $0x68] sm:$0xff]
      %v189 = vld [vmem:[%s166 + $0x70] sm:$0xff]
      %v190 = vld [vmem:[%s166 + $0x78] sm:$0xff]
      %v191 = vld [vmem:[%s166 + $0x80] sm:$0xff]
      %v192 = vld [vmem:[%s166 + $0x88] sm:$0xff]
      %v193 = vld [vmem:[%s166 + $0x90] sm:$0xff]
      %v194 = vld [vmem:[%s166 + $0x98] sm:$0xff]
      %v195 = vld [vmem:[%s166 + $0xa0] sm:$0xff]
      %v196 = vld [vmem:[%s166 + $0xa8] sm:$0xff]
      %v197 = vld [vmem:[%s166 + $0xb0] sm:$0xff]
      %v198 = vld [vmem:[%s166 + $0xb8] sm:$0xff]
      %v199 = vld [vmem:[%s166 + $0xc0] sm:$0xff]
      %v200 = vld [vmem:[%s166 + $0xc8] sm:$0xff]
      %v201 = vld [vmem:[%s166 + $0xd0] sm:$0xff]
      %v202 = vld [vmem:[%s166 + $0xd8] sm:$0xff]
      %v203 = vld [vmem:[%s166 + $0xe0] sm:$0xff]
      %v204 = vld [vmem:[%s166 + $0xe8] sm:$0xff]
      %v205 = vld [vmem:[%s166 + $0xf0] sm:$0xff]
      %v206 = vld [vmem:[%s166 + $0xf8] sm:$0xff]
      %v207 = vld [vmem:[%s1] sm:$0xff]
      %v208 = vld [vmem:[%s1 + $0x8] sm:$0xff]
      %v209 = vld [vmem:[%s1 + $0x10] sm:$0xff]
      %v210 = vld [vmem:[%s1 + $0x18] sm:$0xff]
      %v211 = vld [vmem:[%s1 + $0x20] sm:$0xff]
      %v212 = vld [vmem:[%s1 + $0x28] sm:$0xff]
      %v213 = vld [vmem:[%s1 + $0x30] sm:$0xff]
      %v214 = vld [vmem:[%s1 + $0x38] sm:$0xff]
      %v215 = vld [vmem:[%s1 + $0x40] sm:$0xff]
      %v216 = vpack.c.bf16 %v176, %v175
      %v217 = vpack.c.bf16 %v178, %v177
      %v218 = vpack.c.bf16 %v180, %v179
      %v219 = vpack.c.bf16 %v182, %v181
      %v220 = vpack.c.bf16 %v184, %v183
      %v221 = vpack.c.bf16 %v186, %v185
      %v222 = vpack.c.bf16 %v188, %v187
      %v223 = vpack.c.bf16 %v190, %v189
      %v224 = vpack.c.bf16 %v192, %v191
      %v225 = vpack.c.bf16 %v194, %v193
      %v226 = vpack.c.bf16 %v196, %v195
      %v227 = vpack.c.bf16 %v198, %v197
      %v228 = vpack.c.bf16 %v200, %v199
      %v229 = vpack.c.bf16 %v202, %v201
      %v230 = vpack.c.bf16 %v204, %v203
      %v231 = vpack.c.bf16 %v206, %v205
      %v232 = vpack.c.bf16 %v208, %v207
      %v233 = vpack.c.bf16 %v210, %v209
      %v234 = vpack.c.bf16 %v212, %v211
      %v235 = vpack.c.bf16 %v214, %v213
      %v236 = vpack.c.bf16 %v215, %v215
      %v237 = vld [vmem:[%s2] sm:$0x1]
      %v239 = vlaneseq
      %v240 = vshrl.u32 %v239, 7
      %v241 = vsub.s32 0, %v240
      %v242 = vrot.slane %v237, %v241
      %vm244 = vcmask 588800
      %v246 = vsel %vm244, %v216, 0
      %v249 = vsel %vm244, %v217, 0
      %v252 = vsel %vm244, %v218, 0
      %v255 = vsel %vm244, %v219, 0
      %v258 = vsel %vm244, %v220, 0
      %v261 = vsel %vm244, %v221, 0
      %v264 = vsel %vm244, %v222, 0
      %v267 = vsel %vm244, %v223, 0
      %v270 = vsel %vm244, %v224, 0
      %v273 = vsel %vm244, %v225, 0
      %v276 = vsel %vm244, %v226, 0
      %v279 = vsel %vm244, %v227, 0
      %v282 = vsel %vm244, %v228, 0
      %v285 = vsel %vm244, %v229, 0
      %v288 = vsel %vm244, %v230, 0
      %v291 = vsel %vm244, %v231, 0
      %vm293 = vcmask 1043456
      %v295 = vsel %vm293, %v236, 0
      %297 = vmatprep.subr.bf16.mxu0 0
      %298 = vmatpush1.bf16.msra.mxu0 %v232
      %299 = vmatprep.subr.bf16.mxu0 0
      %300 = vmatpush1.bf16.msra.mxu0 %v233
      %301 = vmatprep.subr.bf16.mxu0 0
      %302 = vmatpush1.bf16.msra.mxu0 %v234
      %303 = vmatprep.subr.bf16.mxu0 0
      %304 = vmatpush1.bf16.msra.mxu0 %v235
      %305 = vmatprep.subr.bf16.mxu0 0
      %306 = vmatpush1.bf16.msra.mxu0 %v295
      %307 = vmatprep.subr.bf16.mxu0 0
      %308 = vmatpush1.bf16.msra.mxu0 0
      %309 = vmatprep.subr.bf16.mxu0 0
      %310 = vmatpush1.bf16.msra.mxu0 0
      %311 = vmatprep.subr.bf16.mxu0 0
      %312 = vmatpush1.bf16.msra.mxu0 0
      %313 = vmatprep.subr.bf16.mxu0 0
      %314 = vmatpush1.bf16.msra.mxu0 0
      %315 = vmatprep.subr.bf16.mxu0 0
      %316 = vmatpush1.bf16.msra.mxu0 0
      %317 = vmatprep.subr.bf16.mxu0 0
      %318 = vmatpush1.bf16.msra.mxu0 0
      %319 = vmatprep.subr.bf16.mxu0 0
      %320 = vmatpush1.bf16.msra.mxu0 0
      %321 = vmatprep.subr.bf16.mxu0 0
      %322 = vmatpush1.bf16.msra.mxu0 0
      %323 = vmatprep.subr.bf16.mxu0 0
      %324 = vmatpush1.bf16.msra.mxu0 0
      %325 = vmatprep.subr.bf16.mxu0 0
      %326 = vmatpush1.bf16.msra.mxu0 0
      %327 = vmatprep.subr.bf16.mxu0 0
      %328 = vmatpush1.bf16.msra.mxu0 0
      %329 = vmatprep.mubr.bf16.mxu0 0
      %330 = vmatmul.mubr.bf16.gmra.mrb[0].mxu0 %v246
      %v331 = vpop.f32.mrb[0].mxu0
      %v332 = vadd.f32 %v242, %v331
      %v333 = vpop.f32.mrb[0].mxu0
      %v334 = vpop.f32.mrb[0].mxu0
      %v335 = vadd.f32 %v242, %v334
      %v336 = vpop.f32.mrb[0].mxu0
      %337 = vmatprep.mubr.bf16.mxu0 0
      %338 = vmatmul.mubr.bf16.gmra.mrb[0].mxu0 %v249
      %v339 = vpop.f32.mrb[0].mxu0
      %v340 = vadd.f32 %v242, %v339
      %v341 = vpop.f32.mrb[0].mxu0
      %v342 = vpop.f32.mrb[0].mxu0
      %v343 = vadd.f32 %v242, %v342
      %v344 = vpop.f32.mrb[0].mxu0
      %345 = vmatprep.mubr.bf16.mxu0 0
      %346 = vmatmul.mubr.bf16.gmra.mrb[0].mxu0 %v252
      %v347 = vpop.f32.mrb[0].mxu0
      %v348 = vadd.f32 %v242, %v347
      %v349 = vpop.f32.mrb[0].mxu0
      %v350 = vpop.f32.mrb[0].mxu0
      %v351 = vadd.f32 %v242, %v350
      %v352 = vpop.f32.mrb[0].mxu0
      %353 = vmatprep.mubr.bf16.mxu0 0
      %354 = vmatmul.mubr.bf16.gmra.mrb[0].mxu0 %v255
      %v355 = vpop.f32.mrb[0].mxu0
      %v356 = vadd.f32 %v242, %v355
      %v357 = vpop.f32.mrb[0].mxu0
      %v358 = vpop.f32.mrb[0].mxu0
      %v359 = vadd.f32 %v242, %v358
      %v360 = vpop.f32.mrb[0].mxu0
      %361 = vmatprep.mubr.bf16.mxu0 0
      %362 = vmatmul.mubr.bf16.gmra.mrb[0].mxu0 %v258
      %v363 = vpop.f32.mrb[0].mxu0
      %v364 = vadd.f32 %v242, %v363
      %v365 = vpop.f32.mrb[0].mxu0
      %v366 = vpop.f32.mrb[0].mxu0
      %v367 = vadd.f32 %v242, %v366
      %v368 = vpop.f32.mrb[0].mxu0
      %369 = vmatprep.mubr.bf16.mxu0 0
      %370 = vmatmul.mubr.bf16.gmra.mrb[0].mxu0 %v261
      %v371 = vpop.f32.mrb[0].mxu0
      %v372 = vadd.f32 %v242, %v371
      %v373 = vpop.f32.mrb[0].mxu0
      %v374 = vpop.f32.mrb[0].mxu0
      %v375 = vadd.f32 %v242, %v374
      %v376 = vpop.f32.mrb[0].mxu0
      %377 = vmatprep.mubr.bf16.mxu0 0
      %378 = vmatmul.mubr.bf16.gmra.mrb[0].mxu0 %v264
      %v379 = vpop.f32.mrb[0].mxu0
      %v380 = vadd.f32 %v242, %v379
      %v381 = vpop.f32.mrb[0].mxu0
      %v382 = vpop.f32.mrb[0].mxu0
      %v383 = vadd.f32 %v242, %v382
      %v384 = vpop.f32.mrb[0].mxu0
      %385 = vmatprep.mubr.bf16.mxu0 0
      %386 = vmatmul.mubr.bf16.gmra.mrb[0].mxu0 %v267
      %v387 = vpop.f32.mrb[0].mxu0
      %v388 = vadd.f32 %v242, %v387
      %v389 = vpop.f32.mrb[0].mxu0
      %v390 = vpop.f32.mrb[0].mxu0
      %v391 = vadd.f32 %v242, %v390
      %v392 = vpop.f32.mrb[0].mxu0
      %393 = vmatprep.mubr.bf16.mxu0 0
      %394 = vmatmul.mubr.bf16.gmra.mrb[0].mxu0 %v270
      %v395 = vpop.f32.mrb[0].mxu0
      %v396 = vadd.f32 %v242, %v395
      %v397 = vpop.f32.mrb[0].mxu0
      %v398 = vpop.f32.mrb[0].mxu0
      %v399 = vadd.f32 %v242, %v398
      %v400 = vpop.f32.mrb[0].mxu0
      %401 = vmatprep.mubr.bf16.mxu0 0
      %402 = vmatmul.mubr.bf16.gmra.mrb[0].mxu0 %v273
      %v403 = vpop.f32.mrb[0].mxu0
      %v404 = vadd.f32 %v242, %v403
      %v405 = vpop.f32.mrb[0].mxu0
      %v406 = vpop.f32.mrb[0].mxu0
      %v407 = vadd.f32 %v242, %v406
      %v408 = vpop.f32.mrb[0].mxu0
      %409 = vmatprep.mubr.bf16.mxu0 0
      %410 = vmatmul.mubr.bf16.gmra.mrb[0].mxu0 %v276
      %v411 = vpop.f32.mrb[0].mxu0
      %v412 = vadd.f32 %v242, %v411
      %v413 = vpop.f32.mrb[0].mxu0
      %v414 = vpop.f32.mrb[0].mxu0
      %v415 = vadd.f32 %v242, %v414
      %v416 = vpop.f32.mrb[0].mxu0
      %417 = vmatprep.mubr.bf16.mxu0 0
      %418 = vmatmul.mubr.bf16.gmra.mrb[0].mxu0 %v279
      %v419 = vpop.f32.mrb[0].mxu0
      %v420 = vadd.f32 %v242, %v419
      %v421 = vpop.f32.mrb[0].mxu0
      %v422 = vpop.f32.mrb[0].mxu0
      %v423 = vadd.f32 %v242, %v422
      %v424 = vpop.f32.mrb[0].mxu0
      %425 = vmatprep.mubr.bf16.mxu0 0
      %426 = vmatmul.mubr.bf16.gmra.mrb[0].mxu0 %v282
      %v427 = vpop.f32.mrb[0].mxu0
      %v428 = vadd.f32 %v242, %v427
      %v429 = vpop.f32.mrb[0].mxu0
      %v430 = vpop.f32.mrb[0].mxu0
      %v431 = vadd.f32 %v242, %v430
      %v432 = vpop.f32.mrb[0].mxu0
      %433 = vmatprep.mubr.bf16.mxu0 0
      %434 = vmatmul.mubr.bf16.gmra.mrb[0].mxu0 %v285
      %v435 = vpop.f32.mrb[0].mxu0
      %v436 = vadd.f32 %v242, %v435
      %v437 = vpop.f32.mrb[0].mxu0
      %v438 = vpop.f32.mrb[0].mxu0
      %v439 = vadd.f32 %v242, %v438
      %v440 = vpop.f32.mrb[0].mxu0
      %441 = vmatprep.mubr.bf16.mxu0 0
      %442 = vmatmul.mubr.bf16.gmra.mrb[0].mxu0 %v288
      %v443 = vpop.f32.mrb[0].mxu0
      %v444 = vadd.f32 %v242, %v443
      %v445 = vpop.f32.mrb[0].mxu0
      %v446 = vpop.f32.mrb[0].mxu0
      %v447 = vadd.f32 %v242, %v446
      %v448 = vpop.f32.mrb[0].mxu0
      %449 = vmatprep.mubr.bf16.mxu0 0
      %450 = vmatmul.mubr.bf16.gmra.mrb[0].mxu0 %v291
      %v451 = vpop.f32.mrb[0].mxu0
      %v452 = vadd.f32 %v242, %v451
      %v453 = vpop.f32.mrb[0].mxu0
      %v454 = vpop.f32.mrb[0].mxu0
      %v455 = vadd.f32 %v242, %v454
      %v456 = vpop.f32.mrb[0].mxu0
      %457 = vdwg.mxu0
      %v458 = vxor.u32 %v332, 2147483648
      %v459 = vxor.u32 %v335, 2147483648
      %v460 = vxor.u32 %v340, 2147483648
      %v461 = vxor.u32 %v343, 2147483648
      %v462 = vxor.u32 %v348, 2147483648
      %v463 = vxor.u32 %v351, 2147483648
      %v464 = vxor.u32 %v356, 2147483648
      %v465 = vxor.u32 %v359, 2147483648
      %v466 = vxor.u32 %v364, 2147483648
      %v467 = vxor.u32 %v367, 2147483648
      %v468 = vxor.u32 %v372, 2147483648
      %v469 = vxor.u32 %v375, 2147483648
      %v470 = vxor.u32 %v380, 2147483648
      %v471 = vxor.u32 %v383, 2147483648
      %v472 = vxor.u32 %v388, 2147483648
      %v473 = vxor.u32 %v391, 2147483648
      %v474 = vxor.u32 %v396, 2147483648
      %v475 = vxor.u32 %v399, 2147483648
      %v476 = vxor.u32 %v404, 2147483648
      %v477 = vxor.u32 %v407, 2147483648
      %v478 = vxor.u32 %v412, 2147483648
      %v479 = vxor.u32 %v415, 2147483648
      %v480 = vxor.u32 %v420, 2147483648
      %v481 = vxor.u32 %v423, 2147483648
      %v482 = vxor.u32 %v428, 2147483648
      %v483 = vxor.u32 %v431, 2147483648
      %v484 = vxor.u32 %v436, 2147483648
      %v485 = vxor.u32 %v439, 2147483648
      %v486 = vxor.u32 %v444, 2147483648
      %v487 = vxor.u32 %v447, 2147483648
      %v488 = vxor.u32 %v452, 2147483648
      %v489 = vxor.u32 %v455, 2147483648
      %v490 = vmul.f32 %v458, 1.442695
      %v491 = vpow.pop %v490
      %v492 = vmul.f32 %v459, 1.442695
      %v493 = vpow.pop %v492
      %v494 = vmul.f32 %v460, 1.442695
      %v495 = vpow.pop %v494
      %v496 = vmul.f32 %v461, 1.442695
      %v497 = vpow.pop %v496
      %v498 = vmul.f32 %v462, 1.442695
      %v499 = vpow.pop %v498
      %v500 = vmul.f32 %v463, 1.442695
      %v501 = vpow.pop %v500
      %v502 = vmul.f32 %v464, 1.442695
      %v503 = vpow.pop %v502
      %v504 = vmul.f32 %v465, 1.442695
      %v505 = vpow.pop %v504
      %v506 = vmul.f32 %v466, 1.442695
      %v507 = vpow.pop %v506
      %v508 = vmul.f32 %v467, 1.442695
      %v509 = vpow.pop %v508
      %v510 = vmul.f32 %v468, 1.442695
      %v511 = vpow.pop %v510
      %v512 = vmul.f32 %v469, 1.442695
      %v513 = vpow.pop %v512
      %v514 = vmul.f32 %v470, 1.442695
      %v515 = vpow.pop %v514
      %v516 = vmul.f32 %v471, 1.442695
      %v517 = vpow.pop %v516
      %v518 = vmul.f32 %v472, 1.442695
      %v519 = vpow.pop %v518
      %v520 = vmul.f32 %v473, 1.442695
      %v521 = vpow.pop %v520
      %v522 = vmul.f32 %v474, 1.442695
      %v523 = vpow.pop %v522
      %v524 = vmul.f32 %v475, 1.442695
      %v525 = vpow.pop %v524
      %v526 = vmul.f32 %v476, 1.442695
      %v527 = vpow.pop %v526
      %v528 = vmul.f32 %v477, 1.442695
      %v529 = vpow.pop %v528
      %v530 = vmul.f32 %v478, 1.442695
      %v531 = vpow.pop %v530
      %v532 = vmul.f32 %v479, 1.442695
      %v533 = vpow.pop %v532
      %v534 = vmul.f32 %v480, 1.442695
      %v535 = vpow.pop %v534
      %v536 = vmul.f32 %v481, 1.442695
      %v537 = vpow.pop %v536
      %v538 = vmul.f32 %v482, 1.442695
      %v539 = vpow.pop %v538
      %v540 = vmul.f32 %v483, 1.442695
      %v541 = vpow.pop %v540
      %v542 = vmul.f32 %v484, 1.442695
      %v543 = vpow.pop %v542
      %v544 = vmul.f32 %v485, 1.442695
      %v545 = vpow.pop %v544
      %v546 = vmul.f32 %v486, 1.442695
      %v547 = vpow.pop %v546
      %v548 = vmul.f32 %v487, 1.442695
      %v549 = vpow.pop %v548
      %v550 = vmul.f32 %v488, 1.442695
      %v551 = vpow.pop %v550
      %v552 = vmul.f32 %v489, 1.442695
      %v553 = vpow.pop %v552
      %v554 = vadd.f32 %v491, 1.0
      %v555 = vadd.f32 %v493, 1.0
      %v556 = vadd.f32 %v495, 1.0
      %v557 = vadd.f32 %v497, 1.0
      %v558 = vadd.f32 %v499, 1.0
      %v559 = vadd.f32 %v501, 1.0
      %v560 = vadd.f32 %v503, 1.0
      %v561 = vadd.f32 %v505, 1.0
      %v562 = vadd.f32 %v507, 1.0
      %v563 = vadd.f32 %v509, 1.0
      %v564 = vadd.f32 %v511, 1.0
      %v565 = vadd.f32 %v513, 1.0
      %v566 = vadd.f32 %v515, 1.0
      %v567 = vadd.f32 %v517, 1.0
      %v568 = vadd.f32 %v519, 1.0
      %v569 = vadd.f32 %v521, 1.0
      %v570 = vadd.f32 %v523, 1.0
      %v571 = vadd.f32 %v525, 1.0
      %v572 = vadd.f32 %v527, 1.0
      %v573 = vadd.f32 %v529, 1.0
      %v574 = vadd.f32 %v531, 1.0
      %v575 = vadd.f32 %v533, 1.0
      %v576 = vadd.f32 %v535, 1.0
      %v577 = vadd.f32 %v537, 1.0
      %v578 = vadd.f32 %v539, 1.0
      %v579 = vadd.f32 %v541, 1.0
      %v580 = vadd.f32 %v543, 1.0
      %v581 = vadd.f32 %v545, 1.0
      %v582 = vadd.f32 %v547, 1.0
      %v583 = vadd.f32 %v549, 1.0
      %v584 = vadd.f32 %v551, 1.0
      %v585 = vadd.f32 %v553, 1.0
      %v586 = vrcp.pop %v554
      %v587 = vmul.f32 1.0, %v586
      %v588 = vrcp.pop %v555
      %v589 = vmul.f32 1.0, %v588
      %v590 = vrcp.pop %v556
      %v591 = vmul.f32 1.0, %v590
      %v592 = vrcp.pop %v557
      %v593 = vmul.f32 1.0, %v592
      %v594 = vrcp.pop %v558
      %v595 = vmul.f32 1.0, %v594
      %v596 = vrcp.pop %v559
      %v597 = vmul.f32 1.0, %v596
      %v598 = vrcp.pop %v560
      %v599 = vmul.f32 1.0, %v598
      %v600 = vrcp.pop %v561
      %v601 = vmul.f32 1.0, %v600
      %v602 = vrcp.pop %v562
      %v603 = vmul.f32 1.0, %v602
      %v604 = vrcp.pop %v563
      %v605 = vmul.f32 1.0, %v604
      %v606 = vrcp.pop %v564
      %v607 = vmul.f32 1.0, %v606
      %v608 = vrcp.pop %v565
      %v609 = vmul.f32 1.0, %v608
      %v610 = vrcp.pop %v566
      %v611 = vmul.f32 1.0, %v610
      %v612 = vrcp.pop %v567
      %v613 = vmul.f32 1.0, %v612
      %v614 = vrcp.pop %v568
      %v615 = vmul.f32 1.0, %v614
      %v616 = vrcp.pop %v569
      %v617 = vmul.f32 1.0, %v616
      %v618 = vrcp.pop %v570
      %v619 = vmul.f32 1.0, %v618
      %v620 = vrcp.pop %v571
      %v621 = vmul.f32 1.0, %v620
      %v622 = vrcp.pop %v572
      %v623 = vmul.f32 1.0, %v622
      %v624 = vrcp.pop %v573
      %v625 = vmul.f32 1.0, %v624
      %v626 = vrcp.pop %v574
      %v627 = vmul.f32 1.0, %v626
      %v628 = vrcp.pop %v575
      %v629 = vmul.f32 1.0, %v628
      %v630 = vrcp.pop %v576
      %v631 = vmul.f32 1.0, %v630
      %v632 = vrcp.pop %v577
      %v633 = vmul.f32 1.0, %v632
      %v634 = vrcp.pop %v578
      %v635 = vmul.f32 1.0, %v634
      %v636 = vrcp.pop %v579
      %v637 = vmul.f32 1.0, %v636
      %v638 = vrcp.pop %v580
      %v639 = vmul.f32 1.0, %v638
      %v640 = vrcp.pop %v581
      %v641 = vmul.f32 1.0, %v640
      %v642 = vrcp.pop %v582
      %v643 = vmul.f32 1.0, %v642
      %v644 = vrcp.pop %v583
      %v645 = vmul.f32 1.0, %v644
      %v646 = vrcp.pop %v584
      %v647 = vmul.f32 1.0, %v646
      %v648 = vrcp.pop %v585
      %v649 = vmul.f32 1.0, %v648
      %vm650 = vcmask 31744
      %651 = vst.msk [vmem:[%s172] sm:$0xff] %vm650, %v587
      %652 = vst.msk [vmem:[%s172 + $0x8] sm:$0xff] %vm650, %v589
      %653 = vst.msk [vmem:[%s172 + $0x10] sm:$0xff] %vm650, %v591
      %654 = vst.msk [vmem:[%s172 + $0x18] sm:$0xff] %vm650, %v593
      %655 = vst.msk [vmem:[%s172 + $0x20] sm:$0xff] %vm650, %v595
      %656 = vst.msk [vmem:[%s172 + $0x28] sm:$0xff] %vm650, %v597
      %657 = vst.msk [vmem:[%s172 + $0x30] sm:$0xff] %vm650, %v599
      %658 = vst.msk [vmem:[%s172 + $0x38] sm:$0xff] %vm650, %v601
      %659 = vst.msk [vmem:[%s172 + $0x40] sm:$0xff] %vm650, %v603
      %660 = vst.msk [vmem:[%s172 + $0x48] sm:$0xff] %vm650, %v605
      %661 = vst.msk [vmem:[%s172 + $0x50] sm:$0xff] %vm650, %v607
      %662 = vst.msk [vmem:[%s172 + $0x58] sm:$0xff] %vm650, %v609
      %663 = vst.msk [vmem:[%s172 + $0x60] sm:$0xff] %vm650, %v611
      %664 = vst.msk [vmem:[%s172 + $0x68] sm:$0xff] %vm650, %v613
      %665 = vst.msk [vmem:[%s172 + $0x70] sm:$0xff] %vm650, %v615
      %666 = vst.msk [vmem:[%s172 + $0x78] sm:$0xff] %vm650, %v617
      %667 = vst.msk [vmem:[%s172 + $0x80] sm:$0xff] %vm650, %v619
      %668 = vst.msk [vmem:[%s172 + $0x88] sm:$0xff] %vm650, %v621
      %669 = vst.msk [vmem:[%s172 + $0x90] sm:$0xff] %vm650, %v623
      %670 = vst.msk [vmem:[%s172 + $0x98] sm:$0xff] %vm650, %v625
      %671 = vst.msk [vmem:[%s172 + $0xa0] sm:$0xff] %vm650, %v627
      %672 = vst.msk [vmem:[%s172 + $0xa8] sm:$0xff] %vm650, %v629
      %673 = vst.msk [vmem:[%s172 + $0xb0] sm:$0xff] %vm650, %v631
      %674 = vst.msk [vmem:[%s172 + $0xb8] sm:$0xff] %vm650, %v633
      %675 = vst.msk [vmem:[%s172 + $0xc0] sm:$0xff] %vm650, %v635
      %676 = vst.msk [vmem:[%s172 + $0xc8] sm:$0xff] %vm650, %v637
      %677 = vst.msk [vmem:[%s172 + $0xd0] sm:$0xff] %vm650, %v639
      %678 = vst.msk [vmem:[%s172 + $0xd8] sm:$0xff] %vm650, %v641
      %679 = vst.msk [vmem:[%s172 + $0xe0] sm:$0xff] %vm650, %v643
      %680 = vst.msk [vmem:[%s172 + $0xe8] sm:$0xff] %vm650, %v645
      %681 = vst.msk [vmem:[%s172 + $0xf0] sm:$0xff] %vm650, %v647
      %682 = vst.msk [vmem:[%s172 + $0xf8] sm:$0xff] %vm650, %v649
      %s683 = smul.u32 32, %s14
      %p684 = scmp.lt.s32.totalorder %s683, 63
      %s685 = scalar_select %p684, %s683, 63
      %s686 = smul.addr %s685, 8
      %s687 = scalar_lea.vmem %s3, %s686
      // Predicated region
      $region33: #{vae_forward.11} parent=31 // pred_check
        %p688 = pneg %p100
      $region34: #{vae_forward.11} parent=31 // pred_check_branch
        %690 = sbr.rel (%p688) target = $region36
      $region35: #{vae_forward.11} parent=31 // pred_region
        %s691 = smul.u32 32, %s14
      $region36: #{vae_forward.11} parent=31 // pred_fallthru
        _
    $region32: #{vae_forward.11} parent=5 // pred_fallthru
      _
    %p692 = scmp.le.s32.totalorder 2, %s9
    // Predicated region
    $region37: #{vae_forward.11} parent=5 // pred_check
      %p693 = pneg %p692
    $region38: #{vae_forward.11} parent=5 // pred_check_branch
      %695 = sbr.rel (%p693) target = $region40
    $region39: #{vae_forward.11} parent=5 // pred_region
      %s696 = ssub.s32 %s9, 2
      // Predicated region
      $region41: #{vae_forward.11} parent=39 // pred_check
        %p697 = pneg %p106
      $region42: #{vae_forward.11} parent=39 // pred_check_branch
        %699 = sbr.rel (%p697) target = $region44
      $region43: #{vae_forward.11} parent=39 // pred_region
        %s700 = smul.u32 32, %s15
        %p701 = scmp.lt.s32.totalorder %s700, 63
        %s702 = scalar_select %p701, %s700, 63
        %s703 = smul.addr %s702, 8
        %s704 = scalar_lea.vmem %s3, %s703
      $region44: #{vae_forward.11} parent=39 // pred_fallthru
        _
    $region40: #{vae_forward.11} parent=5 // pred_fallthru
      _
  $region6: #{vae_forward.11} parent=0 // loop_footer
    %s13 = sadd.s32 1, %s9
  $region7: #{vae_forward.11} parent=0 // loop_footer_branch
    %8 = sbr.rel target = $region3
  $region8: #{vae_forward.11} parent=0 // loop_exit
    _

</llo_original>
